<compile_context>
chip_gen: v7x
topology: tpu7x:2x2x1
jax: 0.10.0
libtpu: 0.0.40
codegen_flags: <defaults>
</compile_context>

<pallas_src>
import functools

import jax
import jax.numpy as jnp
import numpy as np
from jax import lax
from jax.experimental import pallas as pl
from jax.experimental.pallas import tpu as pltpu

NEG_SLOPE = 0.01  # nn.LeakyReLU default


def _leaky_relu(x):
    return jnp.where(x >= 0, x, NEG_SLOPE * x)


# --------------------------- kernel 1: fused deconvs -------------------------

def _fused_deconv_kernel(x_ref, w1_ref, b1_ref, w2_ref, b2_ref, o_ref):
    """Fused ConvT(64->32,k2,s2)+LeakyReLU and ConvT(32->16,k2,s2)+LeakyReLU.

    Because stride == kernel == 2, each layer is 4 independent 1x1 convs (one
    per output tap); the taps are packed into the lane axis so the two layers
    become two lane-dense MXU matmuls.

    x_ref : (tP, 64)   bf16  one tile of flattened (B*H*W) pixels, chan last
    w1_ref: (64, 128)  bf16  col = t1*32 + c1     (t1 = 2*a1 + b1)
    b1_ref: (1, 128)   f32
    w2_ref: (128, 256) bf16  kron(I4, W2p): col = t1*64 + t2*16 + c2
    b2_ref: (1, 256)   f32
    o_ref : (tP, 256)  bf16  col = t1*64 + t2*16 + c2
    """
    x = x_ref[...]
    h1 = jnp.dot(x, w1_ref[...], preferred_element_type=jnp.float32)
    h1 = _leaky_relu(h1 + b1_ref[...])                        # (tP, 128) f32
    h2 = jnp.dot(h1.astype(jnp.bfloat16), w2_ref[...],
                 preferred_element_type=jnp.float32)
    h2 = _leaky_relu(h2 + b2_ref[...])                        # (tP, 256) f32
    o_ref[...] = h2.astype(o_ref.dtype)


def _pick_pixel_tile(n_rows):
    """Pixel-row tile: multiple of 8, >=2 grid steps when possible.

    128-MiB-VMEM chips (v5e/v6e): 8192-row tiles, 48 MiB scoped VMEM.
    64-MiB chips (v7x):           4096-row tiles, 32 MiB scoped VMEM.
    """
    target, vmem_bytes = 4096, 32 * 1024 * 1024
    try:
        info_fn = getattr(pltpu, "get_tpu_info", None)
        if info_fn is not None:
            if getattr(info_fn(), "vmem_capacity_bytes", 0) >= 100 * 1024 * 1024:
                target, vmem_bytes = 8192, 48 * 1024 * 1024
    except Exception:
        pass
    if n_rows <= 8:
        return n_rows, vmem_bytes
    tile = max(8, min(target, (((n_rows + 1) // 2) // 8) * 8))
    return min(tile, n_rows), vmem_bytes


def _fused_deconv(x, w1p, b1p, w2bd, b2p):
    P, Cin = x.shape
    tile, vmem_bytes = _pick_pixel_tile(P)
    flops = 2 * P * (64 * 128 + 128 * 256)
    bytes_acc = (P * Cin * 2 + P * 256 * 2
                 + (64 * 128 + 128 * 256) * 2 + (128 + 256) * 4)
    return pl.pallas_call(
        _fused_deconv_kernel,
        out_shape=jax.ShapeDtypeStruct((P, 256), jnp.bfloat16),
        grid=(pl.cdiv(P, tile),),
        in_specs=[
            pl.BlockSpec((tile, Cin), lambda i: (i, 0)),
            pl.BlockSpec((64, 128), lambda i: (0, 0)),
            pl.BlockSpec((1, 128), lambda i: (0, 0)),
            pl.BlockSpec((128, 256), lambda i: (0, 0)),
            pl.BlockSpec((1, 256), lambda i: (0, 0)),
        ],
        out_specs=pl.BlockSpec((tile, 256), lambda i: (i, 0)),
        compiler_params=pltpu.CompilerParams(
            dimension_semantics=("parallel",),
            vmem_limit_bytes=vmem_bytes),
        cost_estimate=pl.CostEstimate(flops=flops, transcendentals=0,
                                      bytes_accessed=bytes_acc),
    )(x, w1p, b1p, w2bd, b2p)


# --------------------- kernel 2: 5x5 conv as 9 MXU matmuls -------------------

def _conv5x5_kernel(h2_ref, m_ref, mask_ref, b3_ref, o_ref, hp_ref, *, P, W, G):
    """ConvTranspose2d(16->1,k5,s1,p2) + bias + LeakyReLU for one image,
    computed directly on the tap-interleaved (P, 256) deconv output.

    Polyphase form:  out[4i+u, 4j+v] = b3 + sum_{di,dj in -1..1}
        h2z[i+di, j+dj, :] @ M[di+1, dj+1][:, 4u+v]
    with h2z = 0 outside the image.  Vertical out-of-range is handled by G
    zero guard rows in the scratch; horizontal (dj = +-1) by the precomputed
    per-row masks applied to the (P,16) dot results.

    h2_ref  : (1, P, 256) bf16   P = H*W coarse pixels
    m_ref   : (9, 256, 16) f32   M[3*(di+1) + (dj+1)]
    mask_ref: (P, 2) f32         col0: (j>=1), col1: (j<=W-2)
    b3_ref  : (1,) f32 SMEM
    o_ref   : (1, P, 16) f32     out[4i+u,4j+v] stored at [i*W+j, 4u+v]
    hp_ref  : (P + 2G, 256) f32 VMEM scratch, G >= W+1, G multiple of 8
    """
    zg = jnp.zeros((G, 256), jnp.float32)
    hp_ref[0:G, :] = zg                       # coarse rows < 0
    hp_ref[G + P:, :] = zg                    # coarse rows >= H
    hp_ref[G:G + P, :] = h2_ref[0].astype(jnp.float32)

    left_ok = mask_ref[:, 0:1]                # (P, 1)
    right_ok = mask_ref[:, 1:2]               # (P, 1)

    acc = jnp.zeros((P, 16), jnp.float32)
    k = 0
    for di in (-1, 0, 1):
        for dj in (-1, 0, 1):
            start = G + di * W + dj           # static flat shift
            sh = hp_ref[start:start + P, :]   # (P, 256) f32
            contrib = jnp.dot(sh, m_ref[k],
                              preferred_element_type=jnp.float32)  # (P, 16)
            if dj == -1:                      # row scaling commutes with the dot
                contrib = contrib * left_ok
            elif dj == 1:
                contrib = contrib * right_ok
            acc = acc + contrib
            k += 1

    y = acc + b3_ref[0]
    o_ref[0] = jnp.where(y >= 0, y, NEG_SLOPE * y).astype(o_ref.dtype)


def _conv5x5(h2_img, m3, colmask, b3, *, H, W):
    B, P, _ = h2_img.shape
    G = ((W + 1 + 7) // 8) * 8
    flops = 2 * B * P * 9 * 256 * 16
    bytes_acc = B * P * 256 * 2 + B * P * 16 * 4 + int(m3.size) * 4
    return pl.pallas_call(
        functools.partial(_conv5x5_kernel, P=P, W=W, G=G),
        out_shape=jax.ShapeDtypeStruct((B, P, 16), jnp.float32),
        grid=(B,),
        in_specs=[
            pl.BlockSpec((1, P, 256), lambda b: (b, 0, 0)),
            pl.BlockSpec((9, 256, 16), lambda b: (0, 0, 0)),
            pl.BlockSpec((P, 2), lambda b: (0, 0)),
            pl.BlockSpec(memory_space=pltpu.MemorySpace.SMEM),
        ],
        out_specs=pl.BlockSpec((1, P, 16), lambda b: (b, 0, 0)),
        scratch_shapes=[pltpu.VMEM((P + 2 * G, 256), jnp.float32)],
        compiler_params=pltpu.CompilerParams(
            dimension_semantics=("parallel",),
            vmem_limit_bytes=32 * 1024 * 1024),
        cost_estimate=pl.CostEstimate(flops=flops, transcendentals=0,
                                      bytes_accessed=bytes_acc),
    )(h2_img, m3, colmask, b3)


# --------------------------------- wrapper -----------------------------------

def decoder_cnn_cell(x_nchw, params):
    """Forward of DecoderCNNCell.  x_nchw: (B, 64, H, W) -> (B, 1, 4H, 4W)."""
    w1p, b1p, w2bd, b2p, m3, b3 = params
    B, Cin, H, W = x_nchw.shape
    P = H * W

    # bf16 BEFORE the NCHW->NHWC relayout: halves the bytes XLA moves.
    x = jnp.transpose(x_nchw.astype(jnp.bfloat16), (0, 2, 3, 1)).reshape(B * P, Cin)

    # Stage 1+2: both stride-2 transposed convs as two lane-dense MXU matmuls.
    y = _fused_deconv(x, w1p, b1p, w2bd, b2p)               # (B*P, 256) bf16

    # Stage 3: 5x5 "same" conv consuming the tap-interleaved layout directly
    # (no wrapper-side pixel-shuffle of the big intermediate).
    jcol = jnp.arange(P, dtype=jnp.int32) % W
    colmask = jnp.stack([(jcol >= 1).astype(jnp.float32),
                         (jcol <= W - 2).astype(jnp.float32)], axis=1)  # (P, 2)
    out_ph = _conv5x5(y.reshape(B, P, 256), m3, colmask, b3, H=H, W=W)  # (B,P,16)

    # Pixel-unshuffle of the FINAL 1-channel output only (tiny; left to XLA).
    out = out_ph.reshape(B, H, W, 4, 4).transpose(0, 1, 3, 2, 4)
    out = out.reshape(B, 4 * H, 4 * W)
    return out[:, None, :, :]                               # (B, 1, 4H, 4W)


# ----------------------------- params & reference ---------------------------

def init_torch_layout_params(key):
    """Deterministic weights in PyTorch ConvTranspose2d layout (Cin, Cout, k, k)."""
    ks = jax.random.split(key, 6)

    def w_init(k, cin, cout, ksz):
        std = 1.0 / (cin * ksz * ksz) ** 0.5
        return jax.random.normal(k, (cin, cout, ksz, ksz), jnp.float32) * std

    W1 = w_init(ks[0], 64, 32, 2)
    b1 = jax.random.normal(ks[1], (32,), jnp.float32) * 0.05
    W2 = w_init(ks[2], 32, 16, 2)
    b2 = jax.random.normal(ks[3], (16,), jnp.float32) * 0.05
    W3 = w_init(ks[4], 16, 1, 5)
    b3 = jax.random.normal(ks[5], (1,), jnp.float32) * 0.05
    return (W1, b1), (W2, b2), (W3, b3)


def _build_conv3_matrices(W3):
    """Fold ConvT(16->1,k5,s1,p2) weights into 9 per-coarse-offset (256, 16)
    matrices so the conv becomes matmuls on the tap-interleaved deconv output
    (column = t1*64 + t2*16 + c2, t1 = 2*a1+b1, t2 = 2*a2+b2,
     fine pixel (4i+2a1+a2, 4j+2b1+b2))."""
    wf = np.asarray(jnp.flip(W3[:, 0], axis=(1, 2)), np.float32)   # (16,5,5)
    M = np.zeros((3, 3, 256, 16), np.float32)
    for t1 in range(4):
        for t2 in range(4):
            up = 2 * (t1 >> 1) + (t2 >> 1)     # fine-row phase of this column grp
            vp = 2 * (t1 & 1) + (t2 & 1)       # fine-col phase
            for c2 in range(16):
                col = t1 * 64 + t2 * 16 + c2
                for u in range(4):
                    for v in range(4):
                        for di in (-1, 0, 1):
                            ry = 4 * di + up - u
                            if not -2 <= ry <= 2:
                                continue
                            for dj in (-1, 0, 1):
                                rx = 4 * dj + vp - v
                                if not -2 <= rx <= 2:
                                    continue
                                M[di + 1, dj + 1, col, 4 * u + v] = \
                                    wf[c2, ry + 2, rx + 2]
    return jnp.asarray(M.reshape(9, 256, 16))


def to_kernel_params(torch_params):
    (W1, b1), (W2, b2), (W3, b3) = torch_params
    # Layer 1: (64,32,2,2) -> (64, 128): col = (2*a1+b1)*32 + c1
    w1p = jnp.transpose(W1, (0, 2, 3, 1)).reshape(64, 128)
    b1p = jnp.tile(b1, 4).reshape(1, 128)
    # Layer 2: (32,16,2,2) -> (32, 64), block-diag over the 4 layer-1 taps
    # -> (128, 256): col = t1*64 + t2*16 + c2.
    w2p = jnp.transpose(W2, (0, 2, 3, 1)).reshape(32, 64)
    w2bd = jnp.kron(jnp.eye(4, dtype=w2p.dtype), w2p)
    b2p = jnp.tile(b2, 16).reshape(1, 256)
    # Layer 3: folded polyphase matrices.
    m3 = _build_conv3_matrices(W3)
    return (w1p.astype(jnp.bfloat16), b1p.astype(jnp.float32),
            w2bd.astype(jnp.bfloat16), b2p.astype(jnp.float32),
            m3, b3.astype(jnp.float32))


def _conv_transpose_ref(x, w, b, stride, pad):
    """Pure-JAX reference for nn.ConvTranspose2d (NCHW, torch weight layout)."""
    k = w.shape[-1]
    w_conv = jnp.transpose(jnp.flip(w, axis=(2, 3)), (1, 0, 2, 3))  # (Cout,Cin,k,k)
    out = jax.lax.conv_general_dilated(
        x, w_conv, window_strides=(1, 1),
        padding=[(k - 1 - pad, k - 1 - pad)] * 2,
        lhs_dilation=(stride, stride),
        dimension_numbers=("NCHW", "OIHW", "NCHW"))
    return out + b[None, :, None, None]


def reference_forward(x, torch_params):
    (W1, b1), (W2, b2), (W3, b3) = torch_params
    h = _leaky_relu(_conv_transpose_ref(x, W1, b1, 2, 0))
    h = _leaky_relu(_conv_transpose_ref(h, W2, b2, 2, 0))
    h = _leaky_relu(_conv_transpose_ref(h, W3, b3, 1, 2))
    return h


if __name__ == "__main__":
    key = jax.random.PRNGKey(0)
    kx, kp = jax.random.split(key)

    B, C, H, W = 2, 64, 4, 4
    x = jax.random.normal(kx, (B, C, H, W), jnp.float32)

    torch_params = init_torch_layout_params(kp)
    params = to_kernel_params(torch_params)

    out = jax.jit(decoder_cnn_cell)(x, params)
    out = jax.block_until_ready(out)

    ref = reference_forward(x, torch_params)
    assert out.shape == (B, 1, 4 * H, 4 * W), out.shape
    # bf16 matmul path -> slightly looser tolerance than pure f32.
    assert jnp.allclose(out, ref, rtol=5e-2, atol=1e-2), \
        float(jnp.max(jnp.abs(out - ref)))

    print("KERNEL_OK")
</pallas_src>

<mosaic_0001>
module attributes {stable_mosaic.version = 11 : i64} {
  func.func @_fused_deconv_kernel(%arg0: i32, %arg1: memref<16x64xbf16, #tpu.memory_space<vmem>>, %arg2: memref<64x128xbf16, #tpu.memory_space<vmem>>, %arg3: memref<1x128xf32, #tpu.memory_space<vmem>>, %arg4: memref<128x256xbf16, #tpu.memory_space<vmem>>, %arg5: memref<1x256xf32, #tpu.memory_space<vmem>>, %arg6: memref<16x256xbf16, #tpu.memory_space<vmem>>) attributes {dimension_semantics = [#tpu.dimension_semantics<parallel>], iteration_bounds = array<i64: 2>, scalar_prefetch = 0 : i64, scratch_operands = 0 : i64, tpu.core_type = #tpu.core_type<tc>, window_params = [{transform_indices = @transform_0, window_bounds = array<i64: 16, 64>}, {pipeline_mode = #tpu.pipeline_mode<synchronous>, transform_indices = @transform_1, window_bounds = array<i64: 64, 128>}, {pipeline_mode = #tpu.pipeline_mode<synchronous>, transform_indices = @transform_2, window_bounds = array<i64: 1, 128>}, {pipeline_mode = #tpu.pipeline_mode<synchronous>, transform_indices = @transform_3, window_bounds = array<i64: 128, 256>}, {pipeline_mode = #tpu.pipeline_mode<synchronous>, transform_indices = @transform_4, window_bounds = array<i64: 1, 256>}, {transform_indices = @transform_5, window_bounds = array<i64: 16, 256>}]} {
    %c0 = arith.constant 0 : index
    %c0_0 = arith.constant 0 : index
    %0 = vector.load %arg1[%c0, %c0_0] : memref<16x64xbf16, #tpu.memory_space<vmem>>, vector<16x64xbf16>
    %c0_1 = arith.constant 0 : index
    %c0_2 = arith.constant 0 : index
    %1 = vector.load %arg2[%c0_1, %c0_2] : memref<64x128xbf16, #tpu.memory_space<vmem>>, vector<64x128xbf16>
    %cst = arith.constant dense<0.000000e+00> : vector<16x128xf32>
    %2 = tpu.matmul %0, %1, %cst {dimension_numbers = #tpu.dot_dimension_numbers<[1], [0], [0], [1], [0, 0, 1, 1], [], []>} : vector<16x64xbf16>, vector<64x128xbf16>, vector<16x128xf32> -> vector<16x128xf32>
    %c0_3 = arith.constant 0 : index
    %c0_4 = arith.constant 0 : index
    %3 = vector.load %arg3[%c0_3, %c0_4] : memref<1x128xf32, #tpu.memory_space<vmem>>, vector<1x128xf32>
    %4 = vector.broadcast %3 : vector<1x128xf32> to vector<16x128xf32>
    %5 = arith.addf %2, %4 : vector<16x128xf32>
    %cst_5 = arith.constant 0.000000e+00 : f32
    %6 = vector.broadcast %cst_5 : f32 to vector<16x128xf32>
    %7 = arith.cmpf oge, %5, %6 : vector<16x128xf32>
    %cst_6 = arith.constant 0.00999999977 : f32
    %8 = vector.broadcast %cst_6 : f32 to vector<16x128xf32>
    %9 = arith.mulf %8, %5 : vector<16x128xf32>
    %10 = arith.select %7, %5, %9 : vector<16x128xi1>, vector<16x128xf32>
    %11 = arith.truncf %10 : vector<16x128xf32> to vector<16x128xbf16>
    %c0_7 = arith.constant 0 : index
    %c0_8 = arith.constant 0 : index
    %12 = vector.load %arg4[%c0_7, %c0_8] : memref<128x256xbf16, #tpu.memory_space<vmem>>, vector<128x256xbf16>
    %cst_9 = arith.constant dense<0.000000e+00> : vector<16x256xf32>
    %13 = tpu.matmul %11, %12, %cst_9 {dimension_numbers = #tpu.dot_dimension_numbers<[1], [0], [0], [1], [0, 0, 1, 1], [], []>} : vector<16x128xbf16>, vector<128x256xbf16>, vector<16x256xf32> -> vector<16x256xf32>
    %c0_10 = arith.constant 0 : index
    %c0_11 = arith.constant 0 : index
    %14 = vector.load %arg5[%c0_10, %c0_11] : memref<1x256xf32, #tpu.memory_space<vmem>>, vector<1x256xf32>
    %15 = vector.broadcast %14 : vector<1x256xf32> to vector<16x256xf32>
    %16 = arith.addf %13, %15 : vector<16x256xf32>
    %cst_12 = arith.constant 0.000000e+00 : f32
    %17 = vector.broadcast %cst_12 : f32 to vector<16x256xf32>
    %18 = arith.cmpf oge, %16, %17 : vector<16x256xf32>
    %cst_13 = arith.constant 0.00999999977 : f32
    %19 = vector.broadcast %cst_13 : f32 to vector<16x256xf32>
    %20 = arith.mulf %19, %16 : vector<16x256xf32>
    %21 = arith.select %18, %16, %20 : vector<16x256xi1>, vector<16x256xf32>
    %22 = arith.truncf %21 : vector<16x256xf32> to vector<16x256xbf16>
    %c0_14 = arith.constant 0 : index
    %c0_15 = arith.constant 0 : index
    %23 = vector.load %arg6[%c0_14, %c0_15] : memref<16x256xbf16, #tpu.memory_space<vmem>>, vector<16x256xbf16>
    tpu.vector_store %arg6[%c0_14, %c0_15], %22 {strides = array<i32>} : memref<16x256xbf16, #tpu.memory_space<vmem>>, vector<16x256xbf16>,
    return
  }
  func.func @transform_0(%arg0: i32) -> (i32, i32) {
    %c0_i32 = arith.constant 0 : i32
    %c0_i32_0 = arith.constant 0 : i32
    return %arg0, %c0_i32 : i32, i32
  }
  func.func @transform_1(%arg0: i32) -> (i32, i32) {
    %c0_i32 = arith.constant 0 : i32
    %c0_i32_0 = arith.constant 0 : i32
    %c0_i32_1 = arith.constant 0 : i32
    return %c0_i32, %c0_i32_0 : i32, i32
  }
  func.func @transform_2(%arg0: i32) -> (i32, i32) {
    %c0_i32 = arith.constant 0 : i32
    %c0_i32_0 = arith.constant 0 : i32
    %c0_i32_1 = arith.constant 0 : i32
    return %c0_i32, %c0_i32_0 : i32, i32
  }
  func.func @transform_3(%arg0: i32) -> (i32, i32) {
    %c0_i32 = arith.constant 0 : i32
    %c0_i32_0 = arith.constant 0 : i32
    %c0_i32_1 = arith.constant 0 : i32
    return %c0_i32, %c0_i32_0 : i32, i32
  }
  func.func @transform_4(%arg0: i32) -> (i32, i32) {
    %c0_i32 = arith.constant 0 : i32
    %c0_i32_0 = arith.constant 0 : i32
    %c0_i32_1 = arith.constant 0 : i32
    return %c0_i32, %c0_i32_0 : i32, i32
  }
  func.func @transform_5(%arg0: i32) -> (i32, i32) {
    %c0_i32 = arith.constant 0 : i32
    %c0_i32_0 = arith.constant 0 : i32
    return %arg0, %c0_i32 : i32, i32
  }
}

module attributes {stable_mosaic.version = 11 : i64} {
  func.func @_conv5x5_kernel(%arg0: i32, %arg1: memref<1x16x256xbf16, #tpu.memory_space<vmem>>, %arg2: memref<9x256x16xf32, #tpu.memory_space<vmem>>, %arg3: memref<16x2xf32, #tpu.memory_space<vmem>>, %arg4: memref<1xf32, #tpu.memory_space<smem>>, %arg5: memref<1x16x16xf32, #tpu.memory_space<vmem>>, %arg6: memref<32x256xf32, #tpu.memory_space<vmem>>) attributes {dimension_semantics = [#tpu.dimension_semantics<parallel>], iteration_bounds = array<i64: 2>, scalar_prefetch = 0 : i64, scratch_operands = 1 : i64, tpu.core_type = #tpu.core_type<tc>, window_params = [{transform_indices = @transform_0, window_bounds = array<i64: 1, 16, 256>}, {pipeline_mode = #tpu.pipeline_mode<synchronous>, transform_indices = @transform_1, window_bounds = array<i64: 9, 256, 16>}, {pipeline_mode = #tpu.pipeline_mode<synchronous>, transform_indices = @transform_2, window_bounds = array<i64: 16, 2>}, {transform_indices = @transform_3, window_bounds = array<i64: 1>}, {transform_indices = @transform_4, window_bounds = array<i64: 1, 16, 16>}]} {
    %cst = arith.constant 0.000000e+00 : f32
    %0 = vector.broadcast %cst : f32 to vector<8x256xf32>
    %c0 = arith.constant 0 : index
    %c0_0 = arith.constant 0 : index
    %1 = vector.load %arg6[%c0, %c0_0] : memref<32x256xf32, #tpu.memory_space<vmem>>, vector<8x256xf32>
    tpu.vector_store %arg6[%c0, %c0_0], %0 {strides = array<i32>} : memref<32x256xf32, #tpu.memory_space<vmem>>, vector<8x256xf32>,
    %c24 = arith.constant 24 : index
    %c0_1 = arith.constant 0 : index
    %2 = vector.load %arg6[%c24, %c0_1] : memref<32x256xf32, #tpu.memory_space<vmem>>, vector<8x256xf32>
    tpu.vector_store %arg6[%c24, %c0_1], %0 {strides = array<i32>} : memref<32x256xf32, #tpu.memory_space<vmem>>, vector<8x256xf32>,
    %c0_2 = arith.constant 0 : index
    %c0_3 = arith.constant 0 : index
    %c0_4 = arith.constant 0 : index
    %3 = vector.load %arg1[%c0_2, %c0_3, %c0_4] : memref<1x16x256xbf16, #tpu.memory_space<vmem>>, vector<1x16x256xbf16>
    %4 = vector.shape_cast %3 : vector<1x16x256xbf16> to vector<16x256xbf16>
    %5 = arith.extf %4 : vector<16x256xbf16> to vector<16x256xf32>
    %c8 = arith.constant 8 : index
    %c0_5 = arith.constant 0 : index
    %6 = vector.load %arg6[%c8, %c0_5] : memref<32x256xf32, #tpu.memory_space<vmem>>, vector<16x256xf32>
    tpu.vector_store %arg6[%c8, %c0_5], %5 {strides = array<i32>} : memref<32x256xf32, #tpu.memory_space<vmem>>, vector<16x256xf32>,
    %c0_6 = arith.constant 0 : index
    %c0_7 = arith.constant 0 : index
    %7 = vector.load %arg3[%c0_6, %c0_7] : memref<16x2xf32, #tpu.memory_space<vmem>>, vector<16x1xf32>
    %c0_8 = arith.constant 0 : index
    %c1 = arith.constant 1 : index
    %8 = vector.load %arg3[%c0_8, %c1] : memref<16x2xf32, #tpu.memory_space<vmem>>, vector<16x1xf32>
    %cst_9 = arith.constant 0.000000e+00 : f32
    %9 = vector.broadcast %cst_9 : f32 to vector<16x16xf32>
    %c3 = arith.constant 3 : index
    %c0_10 = arith.constant 0 : index
    %10 = vector.load %arg6[%c3, %c0_10] : memref<32x256xf32, #tpu.memory_space<vmem>>, vector<16x256xf32>
    %c0_11 = arith.constant 0 : index
    %c0_12 = arith.constant 0 : index
    %c0_13 = arith.constant 0 : index
    %11 = vector.load %arg2[%c0_11, %c0_12, %c0_13] : memref<9x256x16xf32, #tpu.memory_space<vmem>>, vector<1x256x16xf32>
    %12 = vector.shape_cast %11 : vector<1x256x16xf32> to vector<256x16xf32>
    %cst_14 = arith.constant dense<0.000000e+00> : vector<16x16xf32>
    %13 = tpu.matmul %10, %12, %cst_14 {dimension_numbers = #tpu.dot_dimension_numbers<[1], [0], [0], [1], [0, 0, 1, 1], [], []>} : vector<16x256xf32>, vector<256x16xf32>, vector<16x16xf32> -> vector<16x16xf32>
    %14 = vector.broadcast %7 : vector<16x1xf32> to vector<16x16xf32>
    %15 = arith.mulf %13, %14 : vector<16x16xf32>
    %16 = arith.addf %9, %15 : vector<16x16xf32>
    %c4 = arith.constant 4 : index
    %c0_15 = arith.constant 0 : index
    %17 = vector.load %arg6[%c4, %c0_15] : memref<32x256xf32, #tpu.memory_space<vmem>>, vector<16x256xf32>
    %c1_16 = arith.constant 1 : index
    %c0_17 = arith.constant 0 : index
    %c0_18 = arith.constant 0 : index
    %18 = vector.load %arg2[%c1_16, %c0_17, %c0_18] : memref<9x256x16xf32, #tpu.memory_space<vmem>>, vector<1x256x16xf32>
    %19 = vector.shape_cast %18 : vector<1x256x16xf32> to vector<256x16xf32>
    %cst_19 = arith.constant dense<0.000000e+00> : vector<16x16xf32>
    %20 = tpu.matmul %17, %19, %cst_19 {dimension_numbers = #tpu.dot_dimension_numbers<[1], [0], [0], [1], [0, 0, 1, 1], [], []>} : vector<16x256xf32>, vector<256x16xf32>, vector<16x16xf32> -> vector<16x16xf32>
    %21 = arith.addf %16, %20 : vector<16x16xf32>
    %c5 = arith.constant 5 : index
    %c0_20 = arith.constant 0 : index
    %22 = vector.load %arg6[%c5, %c0_20] : memref<32x256xf32, #tpu.memory_space<vmem>>, vector<16x256xf32>
    %c2 = arith.constant 2 : index
    %c0_21 = arith.constant 0 : index
    %c0_22 = arith.constant 0 : index
    %23 = vector.load %arg2[%c2, %c0_21, %c0_22] : memref<9x256x16xf32, #tpu.memory_space<vmem>>, vector<1x256x16xf32>
    %24 = vector.shape_cast %23 : vector<1x256x16xf32> to vector<256x16xf32>
    %cst_23 = arith.constant dense<0.000000e+00> : vector<16x16xf32>
    %25 = tpu.matmul %22, %24, %cst_23 {dimension_numbers = #tpu.dot_dimension_numbers<[1], [0], [0], [1], [0, 0, 1, 1], [], []>} : vector<16x256xf32>, vector<256x16xf32>, vector<16x16xf32> -> vector<16x16xf32>
    %26 = vector.broadcast %8 : vector<16x1xf32> to vector<16x16xf32>
    %27 = arith.mulf %25, %26 : vector<16x16xf32>
    %28 = arith.addf %21, %27 : vector<16x16xf32>
    %c7 = arith.constant 7 : index
    %c0_24 = arith.constant 0 : index
    %29 = vector.load %arg6[%c7, %c0_24] : memref<32x256xf32, #tpu.memory_space<vmem>>, vector<16x256xf32>
    %c3_25 = arith.constant 3 : index
    %c0_26 = arith.constant 0 : index
    %c0_27 = arith.constant 0 : index
    %30 = vector.load %arg2[%c3_25, %c0_26, %c0_27] : memref<9x256x16xf32, #tpu.memory_space<vmem>>, vector<1x256x16xf32>
    %31 = vector.shape_cast %30 : vector<1x256x16xf32> to vector<256x16xf32>
    %cst_28 = arith.constant dense<0.000000e+00> : vector<16x16xf32>
    %32 = tpu.matmul %29, %31, %cst_28 {dimension_numbers = #tpu.dot_dimension_numbers<[1], [0], [0], [1], [0, 0, 1, 1], [], []>} : vector<16x256xf32>, vector<256x16xf32>, vector<16x16xf32> -> vector<16x16xf32>
    %33 = vector.broadcast %7 : vector<16x1xf32> to vector<16x16xf32>
    %34 = arith.mulf %32, %33 : vector<16x16xf32>
    %35 = arith.addf %28, %34 : vector<16x16xf32>
    %c8_29 = arith.constant 8 : index
    %c0_30 = arith.constant 0 : index
    %36 = vector.load %arg6[%c8_29, %c0_30] : memref<32x256xf32, #tpu.memory_space<vmem>>, vector<16x256xf32>
    %c4_31 = arith.constant 4 : index
    %c0_32 = arith.constant 0 : index
    %c0_33 = arith.constant 0 : index
    %37 = vector.load %arg2[%c4_31, %c0_32, %c0_33] : memref<9x256x16xf32, #tpu.memory_space<vmem>>, vector<1x256x16xf32>
    %38 = vector.shape_cast %37 : vector<1x256x16xf32> to vector<256x16xf32>
    %cst_34 = arith.constant dense<0.000000e+00> : vector<16x16xf32>
    %39 = tpu.matmul %36, %38, %cst_34 {dimension_numbers = #tpu.dot_dimension_numbers<[1], [0], [0], [1], [0, 0, 1, 1], [], []>} : vector<16x256xf32>, vector<256x16xf32>, vector<16x16xf32> -> vector<16x16xf32>
    %40 = arith.addf %35, %39 : vector<16x16xf32>
    %c9 = arith.constant 9 : index
    %c0_35 = arith.constant 0 : index
    %41 = vector.load %arg6[%c9, %c0_35] : memref<32x256xf32, #tpu.memory_space<vmem>>, vector<16x256xf32>
    %c5_36 = arith.constant 5 : index
    %c0_37 = arith.constant 0 : index
    %c0_38 = arith.constant 0 : index
    %42 = vector.load %arg2[%c5_36, %c0_37, %c0_38] : memref<9x256x16xf32, #tpu.memory_space<vmem>>, vector<1x256x16xf32>
    %43 = vector.shape_cast %42 : vector<1x256x16xf32> to vector<256x16xf32>
    %cst_39 = arith.constant dense<0.000000e+00> : vector<16x16xf32>
    %44 = tpu.matmul %41, %43, %cst_39 {dimension_numbers = #tpu.dot_dimension_numbers<[1], [0], [0], [1], [0, 0, 1, 1], [], []>} : vector<16x256xf32>, vector<256x16xf32>, vector<16x16xf32> -> vector<16x16xf32>
    %45 = vector.broadcast %8 : vector<16x1xf32> to vector<16x16xf32>
    %46 = arith.mulf %44, %45 : vector<16x16xf32>
    %47 = arith.addf %40, %46 : vector<16x16xf32>
    %c11 = arith.constant 11 : index
    %c0_40 = arith.constant 0 : index
    %48 = vector.load %arg6[%c11, %c0_40] : memref<32x256xf32, #tpu.memory_space<vmem>>, vector<16x256xf32>
    %c6 = arith.constant 6 : index
    %c0_41 = arith.constant 0 : index
    %c0_42 = arith.constant 0 : index
    %49 = vector.load %arg2[%c6, %c0_41, %c0_42] : memref<9x256x16xf32, #tpu.memory_space<vmem>>, vector<1x256x16xf32>
    %50 = vector.shape_cast %49 : vector<1x256x16xf32> to vector<256x16xf32>
    %cst_43 = arith.constant dense<0.000000e+00> : vector<16x16xf32>
    %51 = tpu.matmul %48, %50, %cst_43 {dimension_numbers = #tpu.dot_dimension_numbers<[1], [0], [0], [1], [0, 0, 1, 1], [], []>} : vector<16x256xf32>, vector<256x16xf32>, vector<16x16xf32> -> vector<16x16xf32>
    %52 = vector.broadcast %7 : vector<16x1xf32> to vector<16x16xf32>
    %53 = arith.mulf %51, %52 : vector<16x16xf32>
    %54 = arith.addf %47, %53 : vector<16x16xf32>
    %c12 = arith.constant 12 : index
    %c0_44 = arith.constant 0 : index
    %55 = vector.load %arg6[%c12, %c0_44] : memref<32x256xf32, #tpu.memory_space<vmem>>, vector<16x256xf32>
    %c7_45 = arith.constant 7 : index
    %c0_46 = arith.constant 0 : index
    %c0_47 = arith.constant 0 : index
    %56 = vector.load %arg2[%c7_45, %c0_46, %c0_47] : memref<9x256x16xf32, #tpu.memory_space<vmem>>, vector<1x256x16xf32>
    %57 = vector.shape_cast %56 : vector<1x256x16xf32> to vector<256x16xf32>
    %cst_48 = arith.constant dense<0.000000e+00> : vector<16x16xf32>
    %58 = tpu.matmul %55, %57, %cst_48 {dimension_numbers = #tpu.dot_dimension_numbers<[1], [0], [0], [1], [0, 0, 1, 1], [], []>} : vector<16x256xf32>, vector<256x16xf32>, vector<16x16xf32> -> vector<16x16xf32>
    %59 = arith.addf %54, %58 : vector<16x16xf32>
    %c13 = arith.constant 13 : index
    %c0_49 = arith.constant 0 : index
    %60 = vector.load %arg6[%c13, %c0_49] : memref<32x256xf32, #tpu.memory_space<vmem>>, vector<16x256xf32>
    %c8_50 = arith.constant 8 : index
    %c0_51 = arith.constant 0 : index
    %c0_52 = arith.constant 0 : index
    %61 = vector.load %arg2[%c8_50, %c0_51, %c0_52] : memref<9x256x16xf32, #tpu.memory_space<vmem>>, vector<1x256x16xf32>
    %62 = vector.shape_cast %61 : vector<1x256x16xf32> to vector<256x16xf32>
    %cst_53 = arith.constant dense<0.000000e+00> : vector<16x16xf32>
    %63 = tpu.matmul %60, %62, %cst_53 {dimension_numbers = #tpu.dot_dimension_numbers<[1], [0], [0], [1], [0, 0, 1, 1], [], []>} : vector<16x256xf32>, vector<256x16xf32>, vector<16x16xf32> -> vector<16x16xf32>
    %64 = vector.broadcast %8 : vector<16x1xf32> to vector<16x16xf32>
    %65 = arith.mulf %63, %64 : vector<16x16xf32>
    %66 = arith.addf %59, %65 : vector<16x16xf32>
    %c0_54 = arith.constant 0 : index
    %67 = memref.load %arg4[%c0_54] : memref<1xf32, #tpu.memory_space<smem>>
    %68 = vector.broadcast %67 : f32 to vector<16x16xf32>
    %69 = arith.addf %66, %68 : vector<16x16xf32>
    %cst_55 = arith.constant 0.000000e+00 : f32
    %70 = vector.broadcast %cst_55 : f32 to vector<16x16xf32>
    %71 = arith.cmpf oge, %69, %70 : vector<16x16xf32>
    %cst_56 = arith.constant 0.00999999977 : f32
    %72 = vector.broadcast %cst_56 : f32 to vector<16x16xf32>
    %73 = arith.mulf %72, %69 : vector<16x16xf32>
    %74 = arith.select %71, %69, %73 : vector<16x16xi1>, vector<16x16xf32>
    %c0_57 = arith.constant 0 : index
    %c0_58 = arith.constant 0 : index
    %c0_59 = arith.constant 0 : index
    %75 = vector.load %arg5[%c0_57, %c0_58, %c0_59] : memref<1x16x16xf32, #tpu.memory_space<vmem>>, vector<1x16x16xf32>
    %76 = vector.shape_cast %75 : vector<1x16x16xf32> to vector<16x16xf32>
    %77 = vector.shape_cast %74 : vector<16x16xf32> to vector<1x16x16xf32>
    tpu.vector_store %arg5[%c0_57, %c0_58, %c0_59], %77 {strides = array<i32>} : memref<1x16x16xf32, #tpu.memory_space<vmem>>, vector<1x16x16xf32>,
    return
  }
  func.func @transform_0(%arg0: i32) -> (i32, i32, i32) {
    %c0_i32 = arith.constant 0 : i32
    %c0_i32_0 = arith.constant 0 : i32
    %c0_i32_1 = arith.constant 0 : i32
    return %arg0, %c0_i32, %c0_i32_0 : i32, i32, i32
  }
  func.func @transform_1(%arg0: i32) -> (i32, i32, i32) {
    %c0_i32 = arith.constant 0 : i32
    %c0_i32_0 = arith.constant 0 : i32
    %c0_i32_1 = arith.constant 0 : i32
    %c0_i32_2 = arith.constant 0 : i32
    return %c0_i32, %c0_i32_0, %c0_i32_1 : i32, i32, i32
  }
  func.func @transform_2(%arg0: i32) -> (i32, i32) {
    %c0_i32 = arith.constant 0 : i32
    %c0_i32_0 = arith.constant 0 : i32
    %c0_i32_1 = arith.constant 0 : i32
    return %c0_i32, %c0_i32_0 : i32, i32
  }
  func.func @transform_3(%arg0: i32) -> i32 {
    %c0_i32 = arith.constant 0 : i32
    %c0_i32_0 = arith.constant 0 : i32
    return %c0_i32 : i32
  }
  func.func @transform_4(%arg0: i32) -> (i32, i32, i32) {
    %c0_i32 = arith.constant 0 : i32
    %c0_i32_0 = arith.constant 0 : i32
    %c0_i32_1 = arith.constant 0 : i32
    return %arg0, %c0_i32, %c0_i32_0 : i32, i32, i32
  }
}

</mosaic_0001>

<llo_original>
// kernel: decoder_cnn_cell.2
$region0: #{decoder_cnn_cell.2}
  #allocation0 [shape = 'u32[]', space=smem, size = 0x4, offset = 0x4, fixed_abs, tag = 'smem constant byte address 0x4 - core index']
  #allocation1 [shape = 'u32[144,128]{1,0:T(1,128)}', space=vmem, size = 0x12000, scoped, tag = 'internal scratch']
  %s0 = inlined_call_operand.vmem [shape: bf16[32,64], index: 0, kind: input, shape index: {}]
  %s1 = inlined_call_operand.hbm [shape: bf16[64,128], index: 1, kind: input, shape index: {}]
  %s2 = inlined_call_operand.hbm [shape: f32[1,128], index: 2, kind: input, shape index: {}]
  %s3 = inlined_call_operand.hbm [shape: bf16[128,256], index: 3, kind: input, shape index: {}]
  %s4 = inlined_call_operand.hbm [shape: f32[1,256], index: 4, kind: input, shape index: {}]
  %s5 = inlined_call_operand.vmem [shape: bf16[32,256], index: 5, kind: output, shape index: {}]
  %s6 = sld [smem:[#allocation0]]
  $region69: #{decoder_cnn_cell.2} parent=0
    _
  %s8 = ssub.s32 1, %s6
  %s9 = scalar_select 0, %s8, %s6
  $region1: #{decoder_cnn_cell.2} parent=0
    #allocation2 [shape = 'u8[16384]{0}', space=vmem, size = 0x4000, scoped, tag = 'input window, operand 1, single buffered']
    #allocation3 [shape = 's32[2]{0}', space=sflag, size = 0x8, scoped, tag = 'scoped memory for decoder_cnn_cell.2']
    #allocation4 [shape = 'u8[512]{0}', space=vmem, size = 0x400, scoped, tag = 'input window, operand 2, single buffered']
    #allocation5 [shape = 's32[1]{0}', space=sflag, size = 0x4, scoped, tag = 'scoped memory for decoder_cnn_cell.2']
    #allocation6 [shape = 'u8[65536]{0}', space=vmem, size = 0x10000, scoped, tag = 'input window, operand 3, single buffered']
    #allocation7 [shape = 'u8[1024]{0}', space=vmem, size = 0x400, scoped, tag = 'input window, operand 4, single buffered']
    #allocation8 [shape = 's32[1]{0}', space=sflag, size = 0x4, scoped, tag = 'scoped memory for decoder_cnn_cell.2']
    %10 = vsyncpa [#allocation3], 0
    %11 = vsyncpa [#allocation5], 0
    %12 = vsyncpa [#allocation8], 0
    loop: start=0, step=1, limit=4
    $region2: #{decoder_cnn_cell.2} parent=1 // loop_pre_header
      _
    $region3: #{decoder_cnn_cell.2} parent=1 // loop_header
      %s14 = sphi 0, %s18
      %p15 = scmp.ge.s32.totalorder %s14, 4
      %s24 = sphi 0, %s26
      %s27 = sphi 0, %s24
      %s28 = sphi 0, %s27
      %s44 = sphi 0, %s28
      %s48 = sphi 0, %s48
      %s50 = sphi 0, %s48
      %s51 = sphi 0, %s50
      %s65 = sphi 0, %s51
      %s69 = sphi 0, %s69
      %s71 = sphi 0, %s69
      %s72 = sphi 0, %s71
      %s86 = sphi 0, %s72
      %s90 = sphi 0, %s90
      %s92 = sphi 0, %s90
      %s93 = sphi 0, %s92
      %s107 = sphi 0, %s93
      %s111 = sphi 0, %s111
      %s113 = sphi 0, %s111
      %s114 = sphi 0, %s113
      %s128 = sphi 0, %s114
      %s134 = sphi 0, %s136
      %s137 = sphi 0, %s134
      %s138 = sphi 0, %s137
      %s154 = sphi 0, %s138
    $region4: #{decoder_cnn_cell.2} parent=1 // loop_header_branch
      %17 = sbr.rel (%p15) target = $region8
    $region5: #{decoder_cnn_cell.2} parent=1 // loop_body
      %s19 = ssub.s32 %s14, 1
      %s20 = ssub.s32 %s14, 2
      %s21 = sadd.s32 %s14, 1
      %s22 = ssub.s32 %s14, %s21
      %p23 = scmp.eq.s32.totalorder %s22, 0
      %s25 = sadd.s32 %s24, 1
      %s26 = scalar_select %p23, %s24, %s25
      %p29 = pneg %p23
      %p30 = scmp.eq.s32.totalorder %s14, 1
      %p31 = por %p29, %p30
      %p32 = scmp.ne.s32.totalorder %s24, %s27
      %p33 = scmp.eq.s32.totalorder %s14, 0
      %p34 = por %p32, %p33
      %p35 = scmp.ne.s32.totalorder %s24, %s27
      %p36 = scmp.eq.s32.totalorder %s19, 1
      %p37 = por %p35, %p36
      %p38 = scmp.ne.s32.totalorder %s27, %s28
      %p39 = scmp.eq.s32.totalorder %s19, 0
      %p40 = por %p38, %p39
      %p41 = scmp.ne.s32.totalorder %s27, %s28
      %p42 = scmp.eq.s32.totalorder %s20, 1
      %p43 = por %p41, %p42
      %p45 = scmp.ne.s32.totalorder %s28, %s44
      %p46 = scmp.eq.s32.totalorder %s20, 0
      %p47 = por %p45, %p46
      %s49 = sadd.s32 %s48, 1
      %p52 = scmp.eq.s32.totalorder %s14, 1
      %p53 = scmp.ne.s32.totalorder %s48, %s50
      %p54 = scmp.eq.s32.totalorder %s14, 0
      %p55 = por %p53, %p54
      %p56 = scmp.ne.s32.totalorder %s48, %s50
      %p57 = scmp.eq.s32.totalorder %s19, 1
      %p58 = por %p56, %p57
      %p59 = scmp.ne.s32.totalorder %s50, %s51
      %p60 = scmp.eq.s32.totalorder %s19, 0
      %p61 = por %p59, %p60
      %p62 = scmp.ne.s32.totalorder %s50, %s51
      %p63 = scmp.eq.s32.totalorder %s20, 1
      %p64 = por %p62, %p63
      %p66 = scmp.ne.s32.totalorder %s51, %s65
      %p67 = scmp.eq.s32.totalorder %s20, 0
      %p68 = por %p66, %p67
      %s70 = sadd.s32 %s69, 1
      %p73 = scmp.eq.s32.totalorder %s14, 1
      %p74 = scmp.ne.s32.totalorder %s69, %s71
      %p75 = scmp.eq.s32.totalorder %s14, 0
      %p76 = por %p74, %p75
      %p77 = scmp.ne.s32.totalorder %s69, %s71
      %p78 = scmp.eq.s32.totalorder %s19, 1
      %p79 = por %p77, %p78
      %p80 = scmp.ne.s32.totalorder %s71, %s72
      %p81 = scmp.eq.s32.totalorder %s19, 0
      %p82 = por %p80, %p81
      %p83 = scmp.ne.s32.totalorder %s71, %s72
      %p84 = scmp.eq.s32.totalorder %s20, 1
      %p85 = por %p83, %p84
      %p87 = scmp.ne.s32.totalorder %s72, %s86
      %p88 = scmp.eq.s32.totalorder %s20, 0
      %p89 = por %p87, %p88
      %s91 = sadd.s32 %s90, 1
      %p94 = scmp.eq.s32.totalorder %s14, 1
      %p95 = scmp.ne.s32.totalorder %s90, %s92
      %p96 = scmp.eq.s32.totalorder %s14, 0
      %p97 = por %p95, %p96
      %p98 = scmp.ne.s32.totalorder %s90, %s92
      %p99 = scmp.eq.s32.totalorder %s19, 1
      %p100 = por %p98, %p99
      %p101 = scmp.ne.s32.totalorder %s92, %s93
      %p102 = scmp.eq.s32.totalorder %s19, 0
      %p103 = por %p101, %p102
      %p104 = scmp.ne.s32.totalorder %s92, %s93
      %p105 = scmp.eq.s32.totalorder %s20, 1
      %p106 = por %p104, %p105
      %p108 = scmp.ne.s32.totalorder %s93, %s107
      %p109 = scmp.eq.s32.totalorder %s20, 0
      %p110 = por %p108, %p109
      %s112 = sadd.s32 %s111, 1
      %p115 = scmp.eq.s32.totalorder %s14, 1
      %p116 = scmp.ne.s32.totalorder %s111, %s113
      %p117 = scmp.eq.s32.totalorder %s14, 0
      %p118 = por %p116, %p117
      %p119 = scmp.ne.s32.totalorder %s111, %s113
      %p120 = scmp.eq.s32.totalorder %s19, 1
      %p121 = por %p119, %p120
      %p122 = scmp.ne.s32.totalorder %s113, %s114
      %p123 = scmp.eq.s32.totalorder %s19, 0
      %p124 = por %p122, %p123
      %p125 = scmp.ne.s32.totalorder %s113, %s114
      %p126 = scmp.eq.s32.totalorder %s20, 1
      %p127 = por %p125, %p126
      %p129 = scmp.ne.s32.totalorder %s114, %s128
      %p130 = scmp.eq.s32.totalorder %s20, 0
      %p131 = por %p129, %p130
      %s132 = ssub.s32 %s14, %s21
      %p133 = scmp.eq.s32.totalorder %s132, 0
      %s135 = sadd.s32 %s134, 1
      %s136 = scalar_select %p133, %s134, %s135
      %p139 = pneg %p133
      %p140 = scmp.eq.s32.totalorder %s14, 1
      %p141 = por %p139, %p140
      %p142 = scmp.ne.s32.totalorder %s134, %s137
      %p143 = scmp.eq.s32.totalorder %s14, 0
      %p144 = por %p142, %p143
      %p145 = scmp.ne.s32.totalorder %s134, %s137
      %p146 = scmp.eq.s32.totalorder %s19, 1
      %p147 = por %p145, %p146
      %p148 = scmp.ne.s32.totalorder %s137, %s138
      %p149 = scmp.eq.s32.totalorder %s19, 0
      %p150 = por %p148, %p149
      %p151 = scmp.ne.s32.totalorder %s137, %s138
      %p152 = scmp.eq.s32.totalorder %s20, 1
      %p153 = por %p151, %p152
      %p155 = scmp.ne.s32.totalorder %s138, %s154
      %p156 = scmp.eq.s32.totalorder %s20, 0
      %p157 = por %p155, %p156
      %p158 = scmp.le.s32.totalorder 1, %s14
      %p159 = scmp.lt.s32.totalorder %s14, 3
      %p160 = pnand %p158, %p159
      %p161 = pneg %p160
      // Predicated region
      $region9: #{decoder_cnn_cell.2} parent=5 // pred_check
        _
      $region10: #{decoder_cnn_cell.2} parent=5 // pred_check_branch
        %163 = sbr.rel (%p160) target = $region12
      $region11: #{decoder_cnn_cell.2} parent=5 // pred_region
        %s164 = ssub.s32 %s14, 1
        // Predicated region
        $region13: #{decoder_cnn_cell.2} parent=11 // pred_check
          %p165 = pneg %p61
        $region14: #{decoder_cnn_cell.2} parent=11 // pred_check_branch
          %167 = sbr.rel (%p165) target = $region16
        $region15: #{decoder_cnn_cell.2} parent=11 // pred_region
          %s169 = ssub.s32 512, 512
          %170 = vsyncadd [#allocation3], %s169
          %s171 = sshll.u32 [#allocation2], 4
          %s172 = int_to_ptr.vmem [resolvable:$true] %s171
          %177 = dma.hbm_to_vmem [thread:$0]  %s1, 512, %s172, [#allocation3], 64, 64, 4
        $region16: #{decoder_cnn_cell.2} parent=11 // pred_fallthru
          _
        // Predicated region
        $region17: #{decoder_cnn_cell.2} parent=11 // pred_check
          %p178 = pneg %p82
        $region18: #{decoder_cnn_cell.2} parent=11 // pred_check_branch
          %180 = sbr.rel (%p178) target = $region20
        $region19: #{decoder_cnn_cell.2} parent=11 // pred_region
          %s182 = ssub.s32 16, 16
          %183 = vsyncadd [#allocation5], %s182
          %s185 = sshll.u32 [#allocation4], 4
          %s186 = int_to_ptr.vmem [resolvable:$true] %s185
          %188 = dma.hbm_to_vmem [thread:$0]  %s2, 16, %s186, [#allocation5]
        $region20: #{decoder_cnn_cell.2} parent=11 // pred_fallthru
          _
        // Predicated region
        $region21: #{decoder_cnn_cell.2} parent=11 // pred_check
          %p189 = pneg %p103
        $region22: #{decoder_cnn_cell.2} parent=11 // pred_check_branch
          %191 = sbr.rel (%p189) target = $region24
        $region23: #{decoder_cnn_cell.2} parent=11 // pred_region
          %s193 = ssub.s32 2048, 2048
          %194 = vsyncadd [#allocation5], %s193
          %s195 = sshll.u32 [#allocation6], 4
          %s196 = int_to_ptr.vmem [resolvable:$true] %s195
          %201 = dma.hbm_to_vmem [thread:$0]  %s3, 2048, %s196, [#allocation5], 128, 128, 8
        $region24: #{decoder_cnn_cell.2} parent=11 // pred_fallthru
          _
        // Predicated region
        $region25: #{decoder_cnn_cell.2} parent=11 // pred_check
          %p202 = pneg %p124
        $region26: #{decoder_cnn_cell.2} parent=11 // pred_check_branch
          %204 = sbr.rel (%p202) target = $region28
        $region27: #{decoder_cnn_cell.2} parent=11 // pred_region
          %s206 = ssub.s32 32, 32
          %207 = vsyncadd [#allocation8], %s206
          %s209 = sshll.u32 [#allocation7], 4
          %s210 = int_to_ptr.vmem [resolvable:$true] %s209
          %212 = dma.hbm_to_vmem [thread:$0]  %s4, 32, %s210, [#allocation8]
        $region28: #{decoder_cnn_cell.2} parent=11 // pred_fallthru
          _
      $region12: #{decoder_cnn_cell.2} parent=5 // pred_fallthru
        _
      %p213 = scmp.lt.s32.totalorder %s14, 2
      // Predicated region
      $region29: #{decoder_cnn_cell.2} parent=5 // pred_check
        %p214 = pneg %p213
      $region30: #{decoder_cnn_cell.2} parent=5 // pred_check_branch
        %216 = sbr.rel (%p214) target = $region32
      $region31: #{decoder_cnn_cell.2} parent=5 // pred_region
        // Predicated region
        $region33: #{decoder_cnn_cell.2} parent=31 // pred_check
          %p217 = pneg %p34
        $region34: #{decoder_cnn_cell.2} parent=31 // pred_check_branch
          %219 = sbr.rel (%p217) target = $region36
        $region35: #{decoder_cnn_cell.2} parent=31 // pred_region
          %s220 = smul.u32 2, %s14
          %p221 = scmp.lt.s32.totalorder %s220, 3
          %s222 = scalar_select %p221, %s220, 3
          %s223 = smul.addr %s222, 4
          %s224 = scalar_lea.vmem %s0, %s223
          %s225 = smul.u32 2, %s14
        $region36: #{decoder_cnn_cell.2} parent=31 // pred_fallthru
          _
      $region32: #{decoder_cnn_cell.2} parent=5 // pred_fallthru
        _
      %p226 = scmp.le.s32.totalorder 1, %s14
      %p227 = scmp.lt.s32.totalorder %s14, 3
      %p228 = pnand %p226, %p227
      %p229 = pneg %p228
      // Predicated region
      $region37: #{decoder_cnn_cell.2} parent=5 // pred_check
        _
      $region38: #{decoder_cnn_cell.2} parent=5 // pred_check_branch
        %231 = sbr.rel (%p228) target = $region40
      $region39: #{decoder_cnn_cell.2} parent=5 // pred_region
        %s232 = ssub.s32 %s14, 1
        // Predicated region
        $region41: #{decoder_cnn_cell.2} parent=39 // pred_check
          %p233 = pneg %p61
        $region42: #{decoder_cnn_cell.2} parent=39 // pred_check_branch
          %235 = sbr.rel (%p233) target = $region44
        $region43: #{decoder_cnn_cell.2} parent=39 // pred_region
          %236 = dma.done [#allocation3], 512
        $region44: #{decoder_cnn_cell.2} parent=39 // pred_fallthru
          _
        // Predicated region
        $region45: #{decoder_cnn_cell.2} parent=39 // pred_check
          %p237 = pneg %p82
        $region46: #{decoder_cnn_cell.2} parent=39 // pred_check_branch
          %239 = sbr.rel (%p237) target = $region48
        $region47: #{decoder_cnn_cell.2} parent=39 // pred_region
          %240 = dma.done [#allocation5], 16
        $region48: #{decoder_cnn_cell.2} parent=39 // pred_fallthru
          _
        // Predicated region
        $region49: #{decoder_cnn_cell.2} parent=39 // pred_check
          %p241 = pneg %p103
        $region50: #{decoder_cnn_cell.2} parent=39 // pred_check_branch
          %243 = sbr.rel (%p241) target = $region52
        $region51: #{decoder_cnn_cell.2} parent=39 // pred_region
          %244 = dma.done [#allocation5], 2048
        $region52: #{decoder_cnn_cell.2} parent=39 // pred_fallthru
          _
        // Predicated region
        $region53: #{decoder_cnn_cell.2} parent=39 // pred_check
          %p245 = pneg %p124
        $region54: #{decoder_cnn_cell.2} parent=39 // pred_check_branch
          %247 = sbr.rel (%p245) target = $region56
        $region55: #{decoder_cnn_cell.2} parent=39 // pred_region
          %248 = dma.done [#allocation8], 32
        $region56: #{decoder_cnn_cell.2} parent=39 // pred_fallthru
          _
        %s249 = smul.u32 2, %s19
        %p250 = scmp.lt.s32.totalorder %s249, 3
        %s251 = scalar_select %p250, %s249, 3
        %s252 = smul.addr %s251, 4
        %s253 = scalar_lea.vmem %s0, %s252
        %p254 = pneg %p40
        %p255 = pneg %p37
        %p256 = pneg %p61
        %p257 = pneg %p58
        %p258 = pneg %p82
        %p259 = pneg %p79
        %p260 = pneg %p103
        %p261 = pneg %p100
        %p262 = pneg %p124
        %p263 = pneg %p121
        %p264 = pneg %p150
        %p265 = pneg %p147
        %s266 = smul.u32 2, %s19
        %p267 = scmp.lt.s32.totalorder %s266, 3
        %s268 = scalar_select %p267, %s266, 3
        %s269 = smul.addr %s268, 2
        %s270 = smul.addr %s269, 4
        %s271 = scalar_lea.vmem %s5, %s270
        %s272 = smul.u32 2, %s19
        %p273 = scmp.lt.s32.totalorder %s272, 3
        %s274 = scalar_select %p273, %s272, 3
        %s275 = smul.addr %s274, 4
        %s276 = scalar_lea.vmem %s0, %s275
        %s277 = smul.u32 2, %s19
        %s278 = smul.u32 2, %s19
        %p279 = scmp.lt.s32.totalorder %s278, 3
        %s280 = scalar_select %p279, %s278, 3
        %s281 = smul.addr %s280, 2
        %s282 = smul.addr %s281, 4
        %s283 = scalar_lea.vmem %s5, %s282
        %s284 = smul.u32 2, %s19
        %v286 = vld [vmem:[%s276] sm:$0xf]
        %v287 = vld [vmem:[%s276 + $0x4] sm:$0xf]
        %v288 = vld [vmem:[#allocation2] sm:$0xf]
        %v289 = vld [vmem:[#allocation2 + $0x4] sm:$0xf]
        %v290 = vld [vmem:[#allocation2 + $0x8] sm:$0xf]
        %v291 = vld [vmem:[#allocation2 + $0xc] sm:$0xf]
        %v292 = vld [vmem:[#allocation2 + $0x10] sm:$0xf]
        %v293 = vld [vmem:[#allocation2 + $0x14] sm:$0xf]
        %v294 = vld [vmem:[#allocation2 + $0x18] sm:$0xf]
        %v295 = vld [vmem:[#allocation2 + $0x1c] sm:$0xf]
        %v296 = vld [vmem:[#allocation4] sm:$0x1]
        %v298 = vlaneseq
        %v299 = vshrl.u32 %v298, 7
        %v300 = vsub.s32 0, %v299
        %v301 = vrot.slane %v296, %v300
        %v305 = vunpack.c.l.b16 %v286
        %v306 = vunpack.c.l.b16 %v287
        %v307 = vpack.c.b16 %v306, %v305
        %v316 = vunpack.c.l.b16 %v288
        %v317 = vunpack.c.l.b16 %v289
        %v318 = vunpack.c.l.b16 %v290
        %v319 = vunpack.c.l.b16 %v291
        %v320 = vunpack.c.l.b16 %v292
        %v321 = vunpack.c.l.b16 %v293
        %v322 = vunpack.c.l.b16 %v294
        %v323 = vunpack.c.l.b16 %v295
        %v324 = vpack.c.b16 %v317, %v316
        %v325 = vpack.c.b16 %v319, %v318
        %v326 = vpack.c.b16 %v321, %v320
        %v327 = vpack.c.b16 %v323, %v322
        %vm332 = vcmask 523264
        %v334 = vsel %vm332, %v307, 0
        %336 = vmatprep.subr.bf16.mxu0 0
        %337 = vmatpush1.bf16.msra.mxu0 %v324
        %338 = vmatprep.subr.bf16.mxu0 0
        %339 = vmatpush1.bf16.msra.mxu0 %v325
        %340 = vmatprep.subr.bf16.mxu0 0
        %341 = vmatpush1.bf16.msra.mxu0 %v326
        %342 = vmatprep.subr.bf16.mxu0 0
        %343 = vmatpush1.bf16.msra.mxu0 %v327
        %344 = vmatprep.subr.bf16.mxu0 0
        %345 = vmatpush1.bf16.msra.mxu0 0
        %346 = vmatprep.subr.bf16.mxu0 0
        %347 = vmatpush1.bf16.msra.mxu0 0
        %348 = vmatprep.subr.bf16.mxu0 0
        %349 = vmatpush1.bf16.msra.mxu0 0
        %350 = vmatprep.subr.bf16.mxu0 0
        %351 = vmatpush1.bf16.msra.mxu0 0
        %352 = vmatprep.subr.bf16.mxu0 0
        %353 = vmatpush1.bf16.msra.mxu0 0
        %354 = vmatprep.subr.bf16.mxu0 0
        %355 = vmatpush1.bf16.msra.mxu0 0
        %356 = vmatprep.subr.bf16.mxu0 0
        %357 = vmatpush1.bf16.msra.mxu0 0
        %358 = vmatprep.subr.bf16.mxu0 0
        %359 = vmatpush1.bf16.msra.mxu0 0
        %360 = vmatprep.subr.bf16.mxu0 0
        %361 = vmatpush1.bf16.msra.mxu0 0
        %362 = vmatprep.subr.bf16.mxu0 0
        %363 = vmatpush1.bf16.msra.mxu0 0
        %364 = vmatprep.subr.bf16.mxu0 0
        %365 = vmatpush1.bf16.msra.mxu0 0
        %366 = vmatprep.subr.bf16.mxu0 0
        %367 = vmatpush1.bf16.msra.mxu0 0
        %368 = vmatprep.mubr.bf16.mxu0 0
        %369 = vmatmul.mubr.bf16.gmra.mrb[0].mxu0 %v334
        %v370 = vpop.f32.mrb[0].mxu0
        %v371 = vadd.f32 %v301, %v370
        %v372 = vpop.f32.mrb[0].mxu0
        %v373 = vpop.f32.mrb[0].mxu0
        %v374 = vadd.f32 %v301, %v373
        %v375 = vpop.f32.mrb[0].mxu0
        %376 = vdwg.mxu0
        %vm377 = vcmp.ge.f32.partialorder %v371, 0.0
        %vm378 = vcmp.ge.f32.partialorder %v374, 0.0
        %v379 = vmul.f32 %v371, 0.01
        %v380 = vmul.f32 %v374, 0.01
        %v381 = vsel %vm377, %v371, %v379
        %v382 = vsel %vm378, %v374, %v380
        %v383 = vpack.c.bf16 %v382, %v381
        %v384 = vld [vmem:[#allocation6] sm:$0xff]
        %v385 = vld [vmem:[#allocation6 + $0x8] sm:$0xff]
        %v386 = vld [vmem:[#allocation6 + $0x10] sm:$0xff]
        %v387 = vld [vmem:[#allocation6 + $0x18] sm:$0xff]
        %v388 = vld [vmem:[#allocation6 + $0x20] sm:$0xff]
        %v389 = vld [vmem:[#allocation6 + $0x28] sm:$0xff]
        %v390 = vld [vmem:[#allocation6 + $0x30] sm:$0xff]
        %v391 = vld [vmem:[#allocation6 + $0x38] sm:$0xff]
        %v392 = vld [vmem:[#allocation6 + $0x40] sm:$0xff]
        %v393 = vld [vmem:[#allocation6 + $0x48] sm:$0xff]
        %v394 = vld [vmem:[#allocation6 + $0x50] sm:$0xff]
        %v395 = vld [vmem:[#allocation6 + $0x58] sm:$0xff]
        %v396 = vld [vmem:[#allocation6 + $0x60] sm:$0xff]
        %v397 = vld [vmem:[#allocation6 + $0x68] sm:$0xff]
        %v398 = vld [vmem:[#allocation6 + $0x70] sm:$0xff]
        %v399 = vld [vmem:[#allocation6 + $0x78] sm:$0xff]
        %v400 = vld [vmem:[#allocation7] sm:$0x3]
        %v402 = vlaneseq
        %v403 = vshrl.u32 %v402, 7
        %v404 = vsub.s32 0, %v403
        %v405 = vrot.slane %v400, %v404
        %v406 = vlaneseq
        %v407 = vshrl.u32 %v406, 7
        %v408 = vsub.s32 1, %v407
        %v409 = vrot.slane %v400, %v408
        %v428 = vunpack.c.l.b16 %v384
        %v429 = vunpack.c.h.b16 %v384
        %v430 = vunpack.c.l.b16 %v385
        %v431 = vunpack.c.h.b16 %v385
        %v432 = vunpack.c.l.b16 %v386
        %v433 = vunpack.c.h.b16 %v386
        %v434 = vunpack.c.l.b16 %v387
        %v435 = vunpack.c.h.b16 %v387
        %v436 = vunpack.c.l.b16 %v388
        %v437 = vunpack.c.h.b16 %v388
        %v438 = vunpack.c.l.b16 %v389
        %v439 = vunpack.c.h.b16 %v389
        %v440 = vunpack.c.l.b16 %v390
        %v441 = vunpack.c.h.b16 %v390
        %v442 = vunpack.c.l.b16 %v391
        %v443 = vunpack.c.h.b16 %v391
        %v444 = vunpack.c.l.b16 %v392
        %v445 = vunpack.c.h.b16 %v392
        %v446 = vunpack.c.l.b16 %v393
        %v447 = vunpack.c.h.b16 %v393
        %v448 = vunpack.c.l.b16 %v394
        %v449 = vunpack.c.h.b16 %v394
        %v450 = vunpack.c.l.b16 %v395
        %v451 = vunpack.c.h.b16 %v395
        %v452 = vunpack.c.l.b16 %v396
        %v453 = vunpack.c.h.b16 %v396
        %v454 = vunpack.c.l.b16 %v397
        %v455 = vunpack.c.h.b16 %v397
        %v456 = vunpack.c.l.b16 %v398
        %v457 = vunpack.c.h.b16 %v398
        %v458 = vunpack.c.l.b16 %v399
        %v459 = vunpack.c.h.b16 %v399
        %v460 = vpack.c.b16 %v430, %v428
        %v461 = vpack.c.b16 %v431, %v429
        %v462 = vpack.c.b16 %v434, %v432
        %v463 = vpack.c.b16 %v435, %v433
        %v464 = vpack.c.b16 %v438, %v436
        %v465 = vpack.c.b16 %v439, %v437
        %v466 = vpack.c.b16 %v442, %v440
        %v467 = vpack.c.b16 %v443, %v441
        %v468 = vpack.c.b16 %v446, %v444
        %v469 = vpack.c.b16 %v447, %v445
        %v470 = vpack.c.b16 %v450, %v448
        %v471 = vpack.c.b16 %v451, %v449
        %v472 = vpack.c.b16 %v454, %v452
        %v473 = vpack.c.b16 %v455, %v453
        %v474 = vpack.c.b16 %v458, %v456
        %v475 = vpack.c.b16 %v459, %v457
        %492 = vmatprep.subr.bf16.mxu0 %v461
        %493 = vmatpush1.bf16.msra.mxu0 %v460
        %494 = vmatprep.subr.bf16.mxu0 %v463
        %495 = vmatpush1.bf16.msra.mxu0 %v462
        %496 = vmatprep.subr.bf16.mxu0 %v465
        %497 = vmatpush1.bf16.msra.mxu0 %v464
        %498 = vmatprep.subr.bf16.mxu0 %v467
        %499 = vmatpush1.bf16.msra.mxu0 %v466
        %500 = vmatprep.subr.bf16.mxu0 %v469
        %501 = vmatpush1.bf16.msra.mxu0 %v468
        %502 = vmatprep.subr.bf16.mxu0 %v471
        %503 = vmatpush1.bf16.msra.mxu0 %v470
        %504 = vmatprep.subr.bf16.mxu0 %v473
        %505 = vmatpush1.bf16.msra.mxu0 %v472
        %506 = vmatprep.subr.bf16.mxu0 %v475
        %507 = vmatpush1.bf16.msra.mxu0 %v474
        %508 = vmatprep.subr.bf16.mxu0 0
        %509 = vmatpush1.bf16.msra.mxu0 0
        %510 = vmatprep.subr.bf16.mxu0 0
        %511 = vmatpush1.bf16.msra.mxu0 0
        %512 = vmatprep.subr.bf16.mxu0 0
        %513 = vmatpush1.bf16.msra.mxu0 0
        %514 = vmatprep.subr.bf16.mxu0 0
        %515 = vmatpush1.bf16.msra.mxu0 0
        %516 = vmatprep.subr.bf16.mxu0 0
        %517 = vmatpush1.bf16.msra.mxu0 0
        %518 = vmatprep.subr.bf16.mxu0 0
        %519 = vmatpush1.bf16.msra.mxu0 0
        %520 = vmatprep.subr.bf16.mxu0 0
        %521 = vmatpush1.bf16.msra.mxu0 0
        %522 = vmatprep.subr.bf16.mxu0 0
        %523 = vmatpush1.bf16.msra.mxu0 0
        %524 = vmatprep.mubr.bf16.mxu0 0
        %525 = vmatmul.mubr.bf16.gmra.mrb[0].mxu0 %v383
        %v526 = vpop.f32.mrb[0].mxu0
        %v527 = vadd.f32 %v405, %v526
        %v528 = vpop.f32.mrb[0].mxu0
        %v529 = vadd.f32 %v409, %v528
        %v530 = vpop.f32.mrb[0].mxu0
        %v531 = vadd.f32 %v405, %v530
        %v532 = vpop.f32.mrb[0].mxu0
        %v533 = vadd.f32 %v409, %v532
        %534 = vdwg.mxu0
        %vm535 = vcmp.ge.f32.partialorder %v527, 0.0
        %vm536 = vcmp.ge.f32.partialorder %v529, 0.0
        %vm537 = vcmp.ge.f32.partialorder %v531, 0.0
        %vm538 = vcmp.ge.f32.partialorder %v533, 0.0
        %v539 = vmul.f32 %v527, 0.01
        %v540 = vmul.f32 %v529, 0.01
        %v541 = vmul.f32 %v531, 0.01
        %v542 = vmul.f32 %v533, 0.01
        %v543 = vsel %vm535, %v527, %v539
        %v544 = vsel %vm536, %v529, %v540
        %v545 = vsel %vm537, %v531, %v541
        %v546 = vsel %vm538, %v533, %v542
        %v547 = vpack.c.bf16 %v545, %v543
        %v548 = vpack.c.bf16 %v546, %v544
        %v551 = vunpack.c.l.b16 %v547
        %v552 = vunpack.c.l.b16 %v548
        %v553 = vunpack.c.h.b16 %v547
        %v554 = vunpack.c.h.b16 %v548
        %v555 = vpack.c.b16 %v552, %v551
        %v556 = vpack.c.b16 %v554, %v553
        %559 = vst [vmem:[%s283] sm:$0xff] %v555
        %560 = vst [vmem:[%s283 + $0x8] sm:$0xff] %v556
        %s561 = smul.u32 2, %s19
        %p562 = scmp.lt.s32.totalorder %s561, 3
        %s563 = scalar_select %p562, %s561, 3
        %s564 = smul.addr %s563, 2
        %s565 = smul.addr %s564, 4
        %s566 = scalar_lea.vmem %s5, %s565
        // Predicated region
        $region57: #{decoder_cnn_cell.2} parent=39 // pred_check
          %p567 = pneg %p147
        $region58: #{decoder_cnn_cell.2} parent=39 // pred_check_branch
          %569 = sbr.rel (%p567) target = $region60
        $region59: #{decoder_cnn_cell.2} parent=39 // pred_region
          %s570 = smul.u32 2, %s19
        $region60: #{decoder_cnn_cell.2} parent=39 // pred_fallthru
          _
      $region40: #{decoder_cnn_cell.2} parent=5 // pred_fallthru
        _
      %p571 = scmp.le.s32.totalorder 2, %s14
      // Predicated region
      $region61: #{decoder_cnn_cell.2} parent=5 // pred_check
        %p572 = pneg %p571
      $region62: #{decoder_cnn_cell.2} parent=5 // pred_check_branch
        %574 = sbr.rel (%p572) target = $region64
      $region63: #{decoder_cnn_cell.2} parent=5 // pred_region
        %s575 = ssub.s32 %s14, 2
        // Predicated region
        $region65: #{decoder_cnn_cell.2} parent=63 // pred_check
          %p576 = pneg %p153
        $region66: #{decoder_cnn_cell.2} parent=63 // pred_check_branch
          %578 = sbr.rel (%p576) target = $region68
        $region67: #{decoder_cnn_cell.2} parent=63 // pred_region
          %s579 = smul.u32 2, %s20
          %p580 = scmp.lt.s32.totalorder %s579, 3
          %s581 = scalar_select %p580, %s579, 3
          %s582 = smul.addr %s581, 2
          %s583 = smul.addr %s582, 4
          %s584 = scalar_lea.vmem %s5, %s583
        $region68: #{decoder_cnn_cell.2} parent=63 // pred_fallthru
          _
      $region64: #{decoder_cnn_cell.2} parent=5 // pred_fallthru
        _
    $region6: #{decoder_cnn_cell.2} parent=1 // loop_footer
      %s18 = sadd.s32 1, %s14
    $region7: #{decoder_cnn_cell.2} parent=1 // loop_footer_branch
      %13 = sbr.rel target = $region3
    $region8: #{decoder_cnn_cell.2} parent=1 // loop_exit
      _
    %585 = vsyncpa [#allocation3], 1
    %s586 = scalar_lea.sflag [#allocation3], 1
    %587 = vsyncpa %s586, 1
    %588 = vsyncpa [#allocation5], 1
    %589 = vsyncpa [#allocation8], 1

// kernel: decoder_cnn_cell.3
$region0: #{decoder_cnn_cell.3}
  #allocation0 [shape = 'u32[]', space=smem, size = 0x4, offset = 0x4, fixed_abs, tag = 'smem constant byte address 0x4 - core index']
  #allocation1 [shape = 'u32[144,128]{1,0:T(1,128)}', space=vmem, size = 0x12000, scoped, tag = 'internal scratch']
  #allocation2 [shape = 'f32[32,256]{1,0:T(8,128)}', space=vmem, size = 0x8000, scoped, tag = 'scratch operand']
  #allocation3 [shape = 'f32[1]{0:T(128)S(6)}', space=smem, size = 0x200, scoped, tag = 'scoped memory for decoder_cnn_cell.3']
  %s0 = inlined_call_operand.vmem [shape: bf16[2,16,256], index: 0, kind: input, shape index: {}]
  %s1 = inlined_call_operand.vmem [shape: f32[9,256,16], index: 1, kind: input, shape index: {}]
  %s2 = inlined_call_operand.vmem [shape: f32[16,2], index: 2, kind: input, shape index: {}]
  %s3 = inlined_call_operand.<no memory space> [shape: f32[1], index: 3, kind: input, shape index: {}]
  %s4 = inlined_call_operand.vmem [shape: f32[2,16,16], index: 4, kind: output, shape index: {}]
  %s5 = sld [smem:[#allocation0]]
  $region49: #{decoder_cnn_cell.3} parent=0
    _
  %s7 = ssub.s32 1, %s5
  %s8 = scalar_select 0, %s7, %s5
  %9 = sst [smem:[#allocation3]] %s3
  loop: start=0, step=1, limit=4
  $region2: #{decoder_cnn_cell.3} parent=0 // loop_pre_header
    _
  $region3: #{decoder_cnn_cell.3} parent=0 // loop_header
    %s11 = sphi 0, %s15
    %p12 = scmp.ge.s32.totalorder %s11, 4
    %s21 = sphi 0, %s23
    %s24 = sphi 0, %s21
    %s25 = sphi 0, %s24
    %s41 = sphi 0, %s25
    %s45 = sphi 0, %s45
    %s47 = sphi 0, %s45
    %s48 = sphi 0, %s47
    %s62 = sphi 0, %s48
    %s66 = sphi 0, %s66
    %s68 = sphi 0, %s66
    %s69 = sphi 0, %s68
    %s83 = sphi 0, %s69
    %s87 = sphi 0, %s87
    %s89 = sphi 0, %s87
    %s90 = sphi 0, %s89
    %s104 = sphi 0, %s90
    %s110 = sphi 0, %s112
    %s113 = sphi 0, %s110
    %s114 = sphi 0, %s113
    %s130 = sphi 0, %s114
  $region4: #{decoder_cnn_cell.3} parent=0 // loop_header_branch
    %14 = sbr.rel (%p12) target = $region8
  $region5: #{decoder_cnn_cell.3} parent=0 // loop_body
    %s16 = ssub.s32 %s11, 1
    %s17 = ssub.s32 %s11, 2
    %s18 = sadd.s32 %s11, 1
    %s19 = ssub.s32 %s11, %s18
    %p20 = scmp.eq.s32.totalorder %s19, 0
    %s22 = sadd.s32 %s21, 1
    %s23 = scalar_select %p20, %s21, %s22
    %p26 = pneg %p20
    %p27 = scmp.eq.s32.totalorder %s11, 1
    %p28 = por %p26, %p27
    %p29 = scmp.ne.s32.totalorder %s21, %s24
    %p30 = scmp.eq.s32.totalorder %s11, 0
    %p31 = por %p29, %p30
    %p32 = scmp.ne.s32.totalorder %s21, %s24
    %p33 = scmp.eq.s32.totalorder %s16, 1
    %p34 = por %p32, %p33
    %p35 = scmp.ne.s32.totalorder %s24, %s25
    %p36 = scmp.eq.s32.totalorder %s16, 0
    %p37 = por %p35, %p36
    %p38 = scmp.ne.s32.totalorder %s24, %s25
    %p39 = scmp.eq.s32.totalorder %s17, 1
    %p40 = por %p38, %p39
    %p42 = scmp.ne.s32.totalorder %s25, %s41
    %p43 = scmp.eq.s32.totalorder %s17, 0
    %p44 = por %p42, %p43
    %s46 = sadd.s32 %s45, 1
    %p49 = scmp.eq.s32.totalorder %s11, 1
    %p50 = scmp.ne.s32.totalorder %s45, %s47
    %p51 = scmp.eq.s32.totalorder %s11, 0
    %p52 = por %p50, %p51
    %p53 = scmp.ne.s32.totalorder %s45, %s47
    %p54 = scmp.eq.s32.totalorder %s16, 1
    %p55 = por %p53, %p54
    %p56 = scmp.ne.s32.totalorder %s47, %s48
    %p57 = scmp.eq.s32.totalorder %s16, 0
    %p58 = por %p56, %p57
    %p59 = scmp.ne.s32.totalorder %s47, %s48
    %p60 = scmp.eq.s32.totalorder %s17, 1
    %p61 = por %p59, %p60
    %p63 = scmp.ne.s32.totalorder %s48, %s62
    %p64 = scmp.eq.s32.totalorder %s17, 0
    %p65 = por %p63, %p64
    %s67 = sadd.s32 %s66, 1
    %p70 = scmp.eq.s32.totalorder %s11, 1
    %p71 = scmp.ne.s32.totalorder %s66, %s68
    %p72 = scmp.eq.s32.totalorder %s11, 0
    %p73 = por %p71, %p72
    %p74 = scmp.ne.s32.totalorder %s66, %s68
    %p75 = scmp.eq.s32.totalorder %s16, 1
    %p76 = por %p74, %p75
    %p77 = scmp.ne.s32.totalorder %s68, %s69
    %p78 = scmp.eq.s32.totalorder %s16, 0
    %p79 = por %p77, %p78
    %p80 = scmp.ne.s32.totalorder %s68, %s69
    %p81 = scmp.eq.s32.totalorder %s17, 1
    %p82 = por %p80, %p81
    %p84 = scmp.ne.s32.totalorder %s69, %s83
    %p85 = scmp.eq.s32.totalorder %s17, 0
    %p86 = por %p84, %p85
    %s88 = sadd.s32 %s87, 1
    %p91 = scmp.eq.s32.totalorder %s11, 1
    %p92 = scmp.ne.s32.totalorder %s87, %s89
    %p93 = scmp.eq.s32.totalorder %s11, 0
    %p94 = por %p92, %p93
    %p95 = scmp.ne.s32.totalorder %s87, %s89
    %p96 = scmp.eq.s32.totalorder %s16, 1
    %p97 = por %p95, %p96
    %p98 = scmp.ne.s32.totalorder %s89, %s90
    %p99 = scmp.eq.s32.totalorder %s16, 0
    %p100 = por %p98, %p99
    %p101 = scmp.ne.s32.totalorder %s89, %s90
    %p102 = scmp.eq.s32.totalorder %s17, 1
    %p103 = por %p101, %p102
    %p105 = scmp.ne.s32.totalorder %s90, %s104
    %p106 = scmp.eq.s32.totalorder %s17, 0
    %p107 = por %p105, %p106
    %s108 = ssub.s32 %s11, %s18
    %p109 = scmp.eq.s32.totalorder %s108, 0
    %s111 = sadd.s32 %s110, 1
    %s112 = scalar_select %p109, %s110, %s111
    %p115 = pneg %p109
    %p116 = scmp.eq.s32.totalorder %s11, 1
    %p117 = por %p115, %p116
    %p118 = scmp.ne.s32.totalorder %s110, %s113
    %p119 = scmp.eq.s32.totalorder %s11, 0
    %p120 = por %p118, %p119
    %p121 = scmp.ne.s32.totalorder %s110, %s113
    %p122 = scmp.eq.s32.totalorder %s16, 1
    %p123 = por %p121, %p122
    %p124 = scmp.ne.s32.totalorder %s113, %s114
    %p125 = scmp.eq.s32.totalorder %s16, 0
    %p126 = por %p124, %p125
    %p127 = scmp.ne.s32.totalorder %s113, %s114
    %p128 = scmp.eq.s32.totalorder %s17, 1
    %p129 = por %p127, %p128
    %p131 = scmp.ne.s32.totalorder %s114, %s130
    %p132 = scmp.eq.s32.totalorder %s17, 0
    %p133 = por %p131, %p132
    %p134 = scmp.le.s32.totalorder 1, %s11
    %p135 = scmp.lt.s32.totalorder %s11, 3
    %p136 = pnand %p134, %p135
    %p137 = pneg %p136
    // Predicated region
    $region9: #{decoder_cnn_cell.3} parent=5 // pred_check
      _
    $region10: #{decoder_cnn_cell.3} parent=5 // pred_check_branch
      %139 = sbr.rel (%p136) target = $region12
    $region11: #{decoder_cnn_cell.3} parent=5 // pred_region
      %s140 = ssub.s32 %s11, 1
      // Predicated region
      $region13: #{decoder_cnn_cell.3} parent=11 // pred_check
        %p141 = pneg %p58
      $region14: #{decoder_cnn_cell.3} parent=11 // pred_check_branch
        %143 = sbr.rel (%p141) target = $region16
      $region15: #{decoder_cnn_cell.3} parent=11 // pred_region
        _
      $region16: #{decoder_cnn_cell.3} parent=11 // pred_fallthru
        _
      // Predicated region
      $region17: #{decoder_cnn_cell.3} parent=11 // pred_check
        %p144 = pneg %p79
      $region18: #{decoder_cnn_cell.3} parent=11 // pred_check_branch
        %146 = sbr.rel (%p144) target = $region20
      $region19: #{decoder_cnn_cell.3} parent=11 // pred_region
        _
      $region20: #{decoder_cnn_cell.3} parent=11 // pred_fallthru
        _
      // Predicated region
      $region21: #{decoder_cnn_cell.3} parent=11 // pred_check
        %p147 = pneg %p100
      $region22: #{decoder_cnn_cell.3} parent=11 // pred_check_branch
        %149 = sbr.rel (%p147) target = $region24
      $region23: #{decoder_cnn_cell.3} parent=11 // pred_region
        _
      $region24: #{decoder_cnn_cell.3} parent=11 // pred_fallthru
        _
    $region12: #{decoder_cnn_cell.3} parent=5 // pred_fallthru
      _
    %p150 = scmp.lt.s32.totalorder %s11, 2
    // Predicated region
    $region25: #{decoder_cnn_cell.3} parent=5 // pred_check
      %p151 = pneg %p150
    $region26: #{decoder_cnn_cell.3} parent=5 // pred_check_branch
      %153 = sbr.rel (%p151) target = $region28
    $region27: #{decoder_cnn_cell.3} parent=5 // pred_region
      // Predicated region
      $region29: #{decoder_cnn_cell.3} parent=27 // pred_check
        %p154 = pneg %p31
      $region30: #{decoder_cnn_cell.3} parent=27 // pred_check_branch
        %156 = sbr.rel (%p154) target = $region32
      $region31: #{decoder_cnn_cell.3} parent=27 // pred_region
        %p157 = scmp.lt.s32.totalorder %s11, 1
        %s158 = scalar_select %p157, %s11, 1
        %s159 = smul.addr %s158, 4
        %s160 = smul.addr %s159, 4
        %s161 = scalar_lea.vmem %s0, %s160
      $region32: #{decoder_cnn_cell.3} parent=27 // pred_fallthru
        _
    $region28: #{decoder_cnn_cell.3} parent=5 // pred_fallthru
      _
    %p162 = scmp.le.s32.totalorder 1, %s11
    %p163 = scmp.lt.s32.totalorder %s11, 3
    %p164 = pnand %p162, %p163
    %p165 = pneg %p164
    // Predicated region
    $region33: #{decoder_cnn_cell.3} parent=5 // pred_check
      _
    $region34: #{decoder_cnn_cell.3} parent=5 // pred_check_branch
      %167 = sbr.rel (%p164) target = $region36
    $region35: #{decoder_cnn_cell.3} parent=5 // pred_region
      %s168 = ssub.s32 %s11, 1
      %p169 = scmp.lt.s32.totalorder %s16, 1
      %s170 = scalar_select %p169, %s16, 1
      %s171 = smul.addr %s170, 4
      %s172 = smul.addr %s171, 4
      %s173 = scalar_lea.vmem %s0, %s172
      %p174 = pneg %p37
      %p175 = pneg %p34
      %p176 = pneg %p58
      %p177 = pneg %p55
      %p178 = pneg %p79
      %p179 = pneg %p76
      %p180 = pneg %p100
      %p181 = pneg %p97
      %p182 = pneg %p126
      %p183 = pneg %p123
      %p184 = scmp.lt.s32.totalorder %s16, 1
      %s185 = scalar_select %p184, %s16, 1
      %s186 = smul.addr %s185, 2
      %s187 = smul.addr %s186, 8
      %s188 = scalar_lea.vmem %s4, %s187
      %p189 = scmp.lt.s32.totalorder %s16, 1
      %s190 = scalar_select %p189, %s16, 1
      %s191 = smul.addr %s190, 4
      %s192 = smul.addr %s191, 4
      %s193 = scalar_lea.vmem %s0, %s192
      %p194 = scmp.lt.s32.totalorder %s16, 1
      %s195 = scalar_select %p194, %s16, 1
      %s196 = smul.addr %s195, 2
      %s197 = smul.addr %s196, 8
      %s198 = scalar_lea.vmem %s4, %s197
      %199 = vst [vmem:[#allocation2] sm:$0xff] 0.0
      %200 = vst [vmem:[#allocation2 + $0x8] sm:$0xff] 0.0
      %201 = vst [vmem:[#allocation2 + $0x30] sm:$0xff] 0.0
      %202 = vst [vmem:[#allocation2 + $0x38] sm:$0xff] 0.0
      %v203 = vld [vmem:[%s193] sm:$0xff]
      %v204 = vld [vmem:[%s193 + $0x8] sm:$0xff]
      %v205 = vunpack.c.l.bf16 %v203
      %v206 = vunpack.c.h.bf16 %v203
      %v207 = vunpack.c.l.bf16 %v204
      %v208 = vunpack.c.h.bf16 %v204
      %209 = vst [vmem:[#allocation2 + $0x10] sm:$0xff] %v205
      %210 = vst [vmem:[#allocation2 + $0x18] sm:$0xff] %v206
      %211 = vst [vmem:[#allocation2 + $0x20] sm:$0xff] %v207
      %212 = vst [vmem:[#allocation2 + $0x28] sm:$0xff] %v208
      %v213 = vld [vmem:[%s2] sm:$0xff]
      %v214 = vld [vmem:[%s2 + $0x8] sm:$0xff]
      %v215 = vld [vmem:[#allocation2] sm:$0xf8]
      %v216 = vld [vmem:[#allocation2 + $0x8] sm:$0xf8]
      %v217 = vld [vmem:[#allocation2 + $0x10] sm:$0xff]
      %v218 = vld [vmem:[#allocation2 + $0x18] sm:$0xff]
      %v219 = vld [vmem:[#allocation2 + $0x20] sm:$0x7]
      %v220 = vld [vmem:[#allocation2 + $0x28] sm:$0x7]
      %v221 = vld [vmem:[%s1] sm:$0xff]
      %v222 = vld [vmem:[%s1 + $0x8] sm:$0xff]
      %v223 = vld [vmem:[%s1 + $0x10] sm:$0xff]
      %v224 = vld [vmem:[%s1 + $0x18] sm:$0xff]
      %v225 = vld [vmem:[%s1 + $0x20] sm:$0xff]
      %v226 = vld [vmem:[%s1 + $0x28] sm:$0xff]
      %v227 = vld [vmem:[%s1 + $0x30] sm:$0xff]
      %v228 = vld [vmem:[%s1 + $0x38] sm:$0xff]
      %v229 = vld [vmem:[%s1 + $0x40] sm:$0xff]
      %v230 = vld [vmem:[%s1 + $0x48] sm:$0xff]
      %v231 = vld [vmem:[%s1 + $0x50] sm:$0xff]
      %v232 = vld [vmem:[%s1 + $0x58] sm:$0xff]
      %v233 = vld [vmem:[%s1 + $0x60] sm:$0xff]
      %v234 = vld [vmem:[%s1 + $0x68] sm:$0xff]
      %v235 = vld [vmem:[%s1 + $0x70] sm:$0xff]
      %v236 = vld [vmem:[%s1 + $0x78] sm:$0xff]
      %v237 = vld [vmem:[%s1 + $0x80] sm:$0xff]
      %v238 = vld [vmem:[%s1 + $0x88] sm:$0xff]
      %v239 = vld [vmem:[%s1 + $0x90] sm:$0xff]
      %v240 = vld [vmem:[%s1 + $0x98] sm:$0xff]
      %v241 = vld [vmem:[%s1 + $0xa0] sm:$0xff]
      %v242 = vld [vmem:[%s1 + $0xa8] sm:$0xff]
      %v243 = vld [vmem:[%s1 + $0xb0] sm:$0xff]
      %v244 = vld [vmem:[%s1 + $0xb8] sm:$0xff]
      %v245 = vld [vmem:[%s1 + $0xc0] sm:$0xff]
      %v246 = vld [vmem:[%s1 + $0xc8] sm:$0xff]
      %v247 = vld [vmem:[%s1 + $0xd0] sm:$0xff]
      %v248 = vld [vmem:[%s1 + $0xd8] sm:$0xff]
      %v249 = vld [vmem:[%s1 + $0xe0] sm:$0xff]
      %v250 = vld [vmem:[%s1 + $0xe8] sm:$0xff]
      %v251 = vld [vmem:[%s1 + $0xf0] sm:$0xff]
      %v252 = vld [vmem:[%s1 + $0xf8] sm:$0xff]
      %vm259 = vcmask 1044480
      %v260 = vrot.slane %v215, 3
      %v261 = vrot.slane %v217, 3
      %v262 = vsel %vm259, %v260, %v261
      %v263 = vrot.slane %v216, 3
      %v264 = vrot.slane %v218, 3
      %v265 = vsel %vm259, %v263, %v264
      %v266 = vrot.slane %v219, 3
      %v267 = vsel %vm259, %v261, %v266
      %v268 = vrot.slane %v220, 3
      %v269 = vsel %vm259, %v264, %v268
      %274 = vmatprep.subr.mxu0 0.0
      %275 = vmatpush1.msra.mxu0 %v221
      %276 = vmatprep.subr.mxu0 0.0
      %277 = vmatpush1.msra.mxu0 %v222
      %278 = vmatprep.subr.mxu0 0.0
      %279 = vmatpush1.msra.mxu0 %v223
      %280 = vmatprep.subr.mxu0 0.0
      %281 = vmatpush1.msra.mxu0 %v224
      %282 = vmatprep.subr.mxu0 0.0
      %283 = vmatpush1.msra.mxu0 %v225
      %284 = vmatprep.subr.mxu0 0.0
      %285 = vmatpush1.msra.mxu0 %v226
      %286 = vmatprep.subr.mxu0 0.0
      %287 = vmatpush1.msra.mxu0 %v227
      %288 = vmatprep.subr.mxu0 0.0
      %289 = vmatpush1.msra.mxu0 %v228
      %290 = vmatprep.subr.mxu0 0.0
      %291 = vmatpush1.msra.mxu0 %v229
      %292 = vmatprep.subr.mxu0 0.0
      %293 = vmatpush1.msra.mxu0 %v230
      %294 = vmatprep.subr.mxu0 0.0
      %295 = vmatpush1.msra.mxu0 %v231
      %296 = vmatprep.subr.mxu0 0.0
      %297 = vmatpush1.msra.mxu0 %v232
      %298 = vmatprep.subr.mxu0 0.0
      %299 = vmatpush1.msra.mxu0 %v233
      %300 = vmatprep.subr.mxu0 0.0
      %301 = vmatpush1.msra.mxu0 %v234
      %302 = vmatprep.subr.mxu0 0.0
      %303 = vmatpush1.msra.mxu0 %v235
      %304 = vmatprep.subr.mxu0 0.0
      %305 = vmatpush1.msra.mxu0 %v236
      %306 = vmatprep.subr.mxu0 0.0
      %307 = vmatpush1.msra.mxu0 %v237
      %308 = vmatprep.subr.mxu0 0.0
      %309 = vmatpush1.msra.mxu0 %v238
      %310 = vmatprep.subr.mxu0 0.0
      %311 = vmatpush1.msra.mxu0 %v239
      %312 = vmatprep.subr.mxu0 0.0
      %313 = vmatpush1.msra.mxu0 %v240
      %314 = vmatprep.subr.mxu0 0.0
      %315 = vmatpush1.msra.mxu0 %v241
      %316 = vmatprep.subr.mxu0 0.0
      %317 = vmatpush1.msra.mxu0 %v242
      %318 = vmatprep.subr.mxu0 0.0
      %319 = vmatpush1.msra.mxu0 %v243
      %320 = vmatprep.subr.mxu0 0.0
      %321 = vmatpush1.msra.mxu0 %v244
      %322 = vmatprep.subr.mxu0 0.0
      %323 = vmatpush1.msra.mxu0 %v245
      %324 = vmatprep.subr.mxu0 0.0
      %325 = vmatpush1.msra.mxu0 %v246
      %326 = vmatprep.subr.mxu0 0.0
      %327 = vmatpush1.msra.mxu0 %v247
      %328 = vmatprep.subr.mxu0 0.0
      %329 = vmatpush1.msra.mxu0 %v248
      %330 = vmatprep.subr.mxu0 0.0
      %331 = vmatpush1.msra.mxu0 %v249
      %332 = vmatprep.subr.mxu0 0.0
      %333 = vmatpush1.msra.mxu0 %v250
      %334 = vmatprep.subr.mxu0 0.0
      %335 = vmatpush1.msra.mxu0 %v251
      %336 = vmatprep.subr.mxu0 0.0
      %337 = vmatpush1.msra.mxu0 %v252
      %338 = vmatprep.mubr.f32.mxu0 %v265
      %339 = vmatmul.mubr.f32.gmra.mrb[0].mxu0 %v262
      %v340 = vpop.f32.mrb[0].mxu0
      %v341 = vadd.f32 0.0, %v340
      %v342 = vpop.f32.mrb[0].mxu0
      %343 = vmatprep.mubr.f32.mxu0 %v269
      %344 = vmatmul.mubr.f32.gmra.mrb[0].mxu0 %v267
      %v345 = vpop.f32.mrb[0].mxu0
      %v346 = vadd.f32 0.0, %v345
      %v347 = vpop.f32.mrb[0].mxu0
      %348 = vdwg.mxu0
      %350 = vset.pattern.permute.xlu0 0
      %351 = vperm.xlu0 %350, %v213
      %v352 = vpop.permute.xlu0 %351
      %355 = vset.pattern.permute.xlu0 0
      %356 = vperm.xlu0 %355, %v214
      %v357 = vpop.permute.xlu0 %356
      %v359 = vmul.f32 %v341, %v352
      %v360 = vmul.f32 %v346, %v357
      %v361 = vadd.f32 %v359, 0.0
      %v362 = vadd.f32 %v360, 0.0
      %v363 = vld [vmem:[#allocation2] sm:$0xf0]
      %v364 = vld [vmem:[#allocation2 + $0x8] sm:$0xf0]
      %v365 = vld [vmem:[#allocation2 + $0x20] sm:$0xf]
      %v366 = vld [vmem:[#allocation2 + $0x28] sm:$0xf]
      %s367 = scalar_lea.vmem %s1, 256
      %v368 = vld [vmem:[%s367] sm:$0xff]
      %v369 = vld [vmem:[%s367 + $0x8] sm:$0xff]
      %v370 = vld [vmem:[%s367 + $0x10] sm:$0xff]
      %v371 = vld [vmem:[%s367 + $0x18] sm:$0xff]
      %v372 = vld [vmem:[%s367 + $0x20] sm:$0xff]
      %v373 = vld [vmem:[%s367 + $0x28] sm:$0xff]
      %v374 = vld [vmem:[%s367 + $0x30] sm:$0xff]
      %v375 = vld [vmem:[%s367 + $0x38] sm:$0xff]
      %v376 = vld [vmem:[%s367 + $0x40] sm:$0xff]
      %v377 = vld [vmem:[%s367 + $0x48] sm:$0xff]
      %v378 = vld [vmem:[%s367 + $0x50] sm:$0xff]
      %v379 = vld [vmem:[%s367 + $0x58] sm:$0xff]
      %v380 = vld [vmem:[%s367 + $0x60] sm:$0xff]
      %v381 = vld [vmem:[%s367 + $0x68] sm:$0xff]
      %v382 = vld [vmem:[%s367 + $0x70] sm:$0xff]
      %v383 = vld [vmem:[%s367 + $0x78] sm:$0xff]
      %v384 = vld [vmem:[%s367 + $0x80] sm:$0xff]
      %v385 = vld [vmem:[%s367 + $0x88] sm:$0xff]
      %v386 = vld [vmem:[%s367 + $0x90] sm:$0xff]
      %v387 = vld [vmem:[%s367 + $0x98] sm:$0xff]
      %v388 = vld [vmem:[%s367 + $0xa0] sm:$0xff]
      %v389 = vld [vmem:[%s367 + $0xa8] sm:$0xff]
      %v390 = vld [vmem:[%s367 + $0xb0] sm:$0xff]
      %v391 = vld [vmem:[%s367 + $0xb8] sm:$0xff]
      %v392 = vld [vmem:[%s367 + $0xc0] sm:$0xff]
      %v393 = vld [vmem:[%s367 + $0xc8] sm:$0xff]
      %v394 = vld [vmem:[%s367 + $0xd0] sm:$0xff]
      %v395 = vld [vmem:[%s367 + $0xd8] sm:$0xff]
      %v396 = vld [vmem:[%s367 + $0xe0] sm:$0xff]
      %v397 = vld [vmem:[%s367 + $0xe8] sm:$0xff]
      %v398 = vld [vmem:[%s367 + $0xf0] sm:$0xff]
      %v399 = vld [vmem:[%s367 + $0xf8] sm:$0xff]
      %vm404 = vcmask 1043456
      %v405 = vrot.slane %v363, 4
      %v406 = vrot.slane %v217, 4
      %v407 = vsel %vm404, %v405, %v406
      %v408 = vrot.slane %v364, 4
      %v409 = vrot.slane %v218, 4
      %v410 = vsel %vm404, %v408, %v409
      %v411 = vrot.slane %v365, 4
      %v412 = vsel %vm404, %v406, %v411
      %v413 = vrot.slane %v366, 4
      %v414 = vsel %vm404, %v409, %v413
      %419 = vmatprep.subr.mxu0 0.0
      %420 = vmatpush1.msra.mxu0 %v368
      %421 = vmatprep.subr.mxu0 0.0
      %422 = vmatpush1.msra.mxu0 %v369
      %423 = vmatprep.subr.mxu0 0.0
      %424 = vmatpush1.msra.mxu0 %v370
      %425 = vmatprep.subr.mxu0 0.0
      %426 = vmatpush1.msra.mxu0 %v371
      %427 = vmatprep.subr.mxu0 0.0
      %428 = vmatpush1.msra.mxu0 %v372
      %429 = vmatprep.subr.mxu0 0.0
      %430 = vmatpush1.msra.mxu0 %v373
      %431 = vmatprep.subr.mxu0 0.0
      %432 = vmatpush1.msra.mxu0 %v374
      %433 = vmatprep.subr.mxu0 0.0
      %434 = vmatpush1.msra.mxu0 %v375
      %435 = vmatprep.subr.mxu0 0.0
      %436 = vmatpush1.msra.mxu0 %v376
      %437 = vmatprep.subr.mxu0 0.0
      %438 = vmatpush1.msra.mxu0 %v377
      %439 = vmatprep.subr.mxu0 0.0
      %440 = vmatpush1.msra.mxu0 %v378
      %441 = vmatprep.subr.mxu0 0.0
      %442 = vmatpush1.msra.mxu0 %v379
      %443 = vmatprep.subr.mxu0 0.0
      %444 = vmatpush1.msra.mxu0 %v380
      %445 = vmatprep.subr.mxu0 0.0
      %446 = vmatpush1.msra.mxu0 %v381
      %447 = vmatprep.subr.mxu0 0.0
      %448 = vmatpush1.msra.mxu0 %v382
      %449 = vmatprep.subr.mxu0 0.0
      %450 = vmatpush1.msra.mxu0 %v383
      %451 = vmatprep.subr.mxu0 0.0
      %452 = vmatpush1.msra.mxu0 %v384
      %453 = vmatprep.subr.mxu0 0.0
      %454 = vmatpush1.msra.mxu0 %v385
      %455 = vmatprep.subr.mxu0 0.0
      %456 = vmatpush1.msra.mxu0 %v386
      %457 = vmatprep.subr.mxu0 0.0
      %458 = vmatpush1.msra.mxu0 %v387
      %459 = vmatprep.subr.mxu0 0.0
      %460 = vmatpush1.msra.mxu0 %v388
      %461 = vmatprep.subr.mxu0 0.0
      %462 = vmatpush1.msra.mxu0 %v389
      %463 = vmatprep.subr.mxu0 0.0
      %464 = vmatpush1.msra.mxu0 %v390
      %465 = vmatprep.subr.mxu0 0.0
      %466 = vmatpush1.msra.mxu0 %v391
      %467 = vmatprep.subr.mxu0 0.0
      %468 = vmatpush1.msra.mxu0 %v392
      %469 = vmatprep.subr.mxu0 0.0
      %470 = vmatpush1.msra.mxu0 %v393
      %471 = vmatprep.subr.mxu0 0.0
      %472 = vmatpush1.msra.mxu0 %v394
      %473 = vmatprep.subr.mxu0 0.0
      %474 = vmatpush1.msra.mxu0 %v395
      %475 = vmatprep.subr.mxu0 0.0
      %476 = vmatpush1.msra.mxu0 %v396
      %477 = vmatprep.subr.mxu0 0.0
      %478 = vmatpush1.msra.mxu0 %v397
      %479 = vmatprep.subr.mxu0 0.0
      %480 = vmatpush1.msra.mxu0 %v398
      %481 = vmatprep.subr.mxu0 0.0
      %482 = vmatpush1.msra.mxu0 %v399
      %483 = vmatprep.mubr.f32.mxu0 %v410
      %484 = vmatmul.mubr.f32.gmra.mrb[0].mxu0 %v407
      %v485 = vpop.f32.mrb[0].mxu0
      %v486 = vadd.f32 0.0, %v485
      %v487 = vpop.f32.mrb[0].mxu0
      %488 = vmatprep.mubr.f32.mxu0 %v414
      %489 = vmatmul.mubr.f32.gmra.mrb[0].mxu0 %v412
      %v490 = vpop.f32.mrb[0].mxu0
      %v491 = vadd.f32 0.0, %v490
      %v492 = vpop.f32.mrb[0].mxu0
      %493 = vdwg.mxu0
      %v494 = vadd.f32 %v361, %v486
      %v495 = vadd.f32 %v362, %v491
      %v496 = vld [vmem:[#allocation2] sm:$0xe0]
      %v497 = vld [vmem:[#allocation2 + $0x8] sm:$0xe0]
      %v498 = vld [vmem:[#allocation2 + $0x20] sm:$0x1f]
      %v499 = vld [vmem:[#allocation2 + $0x28] sm:$0x1f]
      %s500 = scalar_lea.vmem %s1, 512
      %v501 = vld [vmem:[%s500] sm:$0xff]
      %v502 = vld [vmem:[%s500 + $0x8] sm:$0xff]
      %v503 = vld [vmem:[%s500 + $0x10] sm:$0xff]
      %v504 = vld [vmem:[%s500 + $0x18] sm:$0xff]
      %v505 = vld [vmem:[%s500 + $0x20] sm:$0xff]
      %v506 = vld [vmem:[%s500 + $0x28] sm:$0xff]
      %v507 = vld [vmem:[%s500 + $0x30] sm:$0xff]
      %v508 = vld [vmem:[%s500 + $0x38] sm:$0xff]
      %v509 = vld [vmem:[%s500 + $0x40] sm:$0xff]
      %v510 = vld [vmem:[%s500 + $0x48] sm:$0xff]
      %v511 = vld [vmem:[%s500 + $0x50] sm:$0xff]
      %v512 = vld [vmem:[%s500 + $0x58] sm:$0xff]
      %v513 = vld [vmem:[%s500 + $0x60] sm:$0xff]
      %v514 = vld [vmem:[%s500 + $0x68] sm:$0xff]
      %v515 = vld [vmem:[%s500 + $0x70] sm:$0xff]
      %v516 = vld [vmem:[%s500 + $0x78] sm:$0xff]
      %v517 = vld [vmem:[%s500 + $0x80] sm:$0xff]
      %v518 = vld [vmem:[%s500 + $0x88] sm:$0xff]
      %v519 = vld [vmem:[%s500 + $0x90] sm:$0xff]
      %v520 = vld [vmem:[%s500 + $0x98] sm:$0xff]
      %v521 = vld [vmem:[%s500 + $0xa0] sm:$0xff]
      %v522 = vld [vmem:[%s500 + $0xa8] sm:$0xff]
      %v523 = vld [vmem:[%s500 + $0xb0] sm:$0xff]
      %v524 = vld [vmem:[%s500 + $0xb8] sm:$0xff]
      %v525 = vld [vmem:[%s500 + $0xc0] sm:$0xff]
      %v526 = vld [vmem:[%s500 + $0xc8] sm:$0xff]
      %v527 = vld [vmem:[%s500 + $0xd0] sm:$0xff]
      %v528 = vld [vmem:[%s500 + $0xd8] sm:$0xff]
      %v529 = vld [vmem:[%s500 + $0xe0] sm:$0xff]
      %v530 = vld [vmem:[%s500 + $0xe8] sm:$0xff]
      %v531 = vld [vmem:[%s500 + $0xf0] sm:$0xff]
      %v532 = vld [vmem:[%s500 + $0xf8] sm:$0xff]
      %vm537 = vcmask 1042432
      %v538 = vrot.slane %v496, 5
      %v539 = vrot.slane %v217, 5
      %v540 = vsel %vm537, %v538, %v539
      %v541 = vrot.slane %v497, 5
      %v542 = vrot.slane %v218, 5
      %v543 = vsel %vm537, %v541, %v542
      %v544 = vrot.slane %v498, 5
      %v545 = vsel %vm537, %v539, %v544
      %v546 = vrot.slane %v499, 5
      %v547 = vsel %vm537, %v542, %v546
      %552 = vmatprep.subr.mxu0 0.0
      %553 = vmatpush1.msra.mxu0 %v501
      %554 = vmatprep.subr.mxu0 0.0
      %555 = vmatpush1.msra.mxu0 %v502
      %556 = vmatprep.subr.mxu0 0.0
      %557 = vmatpush1.msra.mxu0 %v503
      %558 = vmatprep.subr.mxu0 0.0
      %559 = vmatpush1.msra.mxu0 %v504
      %560 = vmatprep.subr.mxu0 0.0
      %561 = vmatpush1.msra.mxu0 %v505
      %562 = vmatprep.subr.mxu0 0.0
      %563 = vmatpush1.msra.mxu0 %v506
      %564 = vmatprep.subr.mxu0 0.0
      %565 = vmatpush1.msra.mxu0 %v507
      %566 = vmatprep.subr.mxu0 0.0
      %567 = vmatpush1.msra.mxu0 %v508
      %568 = vmatprep.subr.mxu0 0.0
      %569 = vmatpush1.msra.mxu0 %v509
      %570 = vmatprep.subr.mxu0 0.0
      %571 = vmatpush1.msra.mxu0 %v510
      %572 = vmatprep.subr.mxu0 0.0
      %573 = vmatpush1.msra.mxu0 %v511
      %574 = vmatprep.subr.mxu0 0.0
      %575 = vmatpush1.msra.mxu0 %v512
      %576 = vmatprep.subr.mxu0 0.0
      %577 = vmatpush1.msra.mxu0 %v513
      %578 = vmatprep.subr.mxu0 0.0
      %579 = vmatpush1.msra.mxu0 %v514
      %580 = vmatprep.subr.mxu0 0.0
      %581 = vmatpush1.msra.mxu0 %v515
      %582 = vmatprep.subr.mxu0 0.0
      %583 = vmatpush1.msra.mxu0 %v516
      %584 = vmatprep.subr.mxu0 0.0
      %585 = vmatpush1.msra.mxu0 %v517
      %586 = vmatprep.subr.mxu0 0.0
      %587 = vmatpush1.msra.mxu0 %v518
      %588 = vmatprep.subr.mxu0 0.0
      %589 = vmatpush1.msra.mxu0 %v519
      %590 = vmatprep.subr.mxu0 0.0
      %591 = vmatpush1.msra.mxu0 %v520
      %592 = vmatprep.subr.mxu0 0.0
      %593 = vmatpush1.msra.mxu0 %v521
      %594 = vmatprep.subr.mxu0 0.0
      %595 = vmatpush1.msra.mxu0 %v522
      %596 = vmatprep.subr.mxu0 0.0
      %597 = vmatpush1.msra.mxu0 %v523
      %598 = vmatprep.subr.mxu0 0.0
      %599 = vmatpush1.msra.mxu0 %v524
      %600 = vmatprep.subr.mxu0 0.0
      %601 = vmatpush1.msra.mxu0 %v525
      %602 = vmatprep.subr.mxu0 0.0
      %603 = vmatpush1.msra.mxu0 %v526
      %604 = vmatprep.subr.mxu0 0.0
      %605 = vmatpush1.msra.mxu0 %v527
      %606 = vmatprep.subr.mxu0 0.0
      %607 = vmatpush1.msra.mxu0 %v528
      %608 = vmatprep.subr.mxu0 0.0
      %609 = vmatpush1.msra.mxu0 %v529
      %610 = vmatprep.subr.mxu0 0.0
      %611 = vmatpush1.msra.mxu0 %v530
      %612 = vmatprep.subr.mxu0 0.0
      %613 = vmatpush1.msra.mxu0 %v531
      %614 = vmatprep.subr.mxu0 0.0
      %615 = vmatpush1.msra.mxu0 %v532
      %616 = vmatprep.mubr.f32.mxu0 %v543
      %617 = vmatmul.mubr.f32.gmra.mrb[0].mxu0 %v540
      %v618 = vpop.f32.mrb[0].mxu0
      %v619 = vadd.f32 0.0, %v618
      %v620 = vpop.f32.mrb[0].mxu0
      %621 = vmatprep.mubr.f32.mxu0 %v547
      %622 = vmatmul.mubr.f32.gmra.mrb[0].mxu0 %v545
      %v623 = vpop.f32.mrb[0].mxu0
      %v624 = vadd.f32 0.0, %v623
      %v625 = vpop.f32.mrb[0].mxu0
      %626 = vdwg.mxu0
      %627 = vset.pattern.permute.xlu0 1
      %628 = vperm.xlu0 %627, %v213
      %v629 = vpop.permute.xlu0 %628
      %631 = vset.pattern.permute.xlu0 1
      %632 = vperm.xlu0 %631, %v214
      %v633 = vpop.permute.xlu0 %632
      %v635 = vmul.f32 %v619, %v629
      %v636 = vmul.f32 %v624, %v633
      %v637 = vadd.f32 %v494, %v635
      %v638 = vadd.f32 %v495, %v636
      %v639 = vld [vmem:[#allocation2] sm:$0x80]
      %v640 = vld [vmem:[#allocation2 + $0x8] sm:$0x80]
      %v641 = vld [vmem:[#allocation2 + $0x20] sm:$0x7f]
      %v642 = vld [vmem:[#allocation2 + $0x28] sm:$0x7f]
      %s643 = scalar_lea.vmem %s1, 768
      %v644 = vld [vmem:[%s643] sm:$0xff]
      %v645 = vld [vmem:[%s643 + $0x8] sm:$0xff]
      %v646 = vld [vmem:[%s643 + $0x10] sm:$0xff]
      %v647 = vld [vmem:[%s643 + $0x18] sm:$0xff]
      %v648 = vld [vmem:[%s643 + $0x20] sm:$0xff]
      %v649 = vld [vmem:[%s643 + $0x28] sm:$0xff]
      %v650 = vld [vmem:[%s643 + $0x30] sm:$0xff]
      %v651 = vld [vmem:[%s643 + $0x38] sm:$0xff]
      %v652 = vld [vmem:[%s643 + $0x40] sm:$0xff]
      %v653 = vld [vmem:[%s643 + $0x48] sm:$0xff]
      %v654 = vld [vmem:[%s643 + $0x50] sm:$0xff]
      %v655 = vld [vmem:[%s643 + $0x58] sm:$0xff]
      %v656 = vld [vmem:[%s643 + $0x60] sm:$0xff]
      %v657 = vld [vmem:[%s643 + $0x68] sm:$0xff]
      %v658 = vld [vmem:[%s643 + $0x70] sm:$0xff]
      %v659 = vld [vmem:[%s643 + $0x78] sm:$0xff]
      %v660 = vld [vmem:[%s643 + $0x80] sm:$0xff]
      %v661 = vld [vmem:[%s643 + $0x88] sm:$0xff]
      %v662 = vld [vmem:[%s643 + $0x90] sm:$0xff]
      %v663 = vld [vmem:[%s643 + $0x98] sm:$0xff]
      %v664 = vld [vmem:[%s643 + $0xa0] sm:$0xff]
      %v665 = vld [vmem:[%s643 + $0xa8] sm:$0xff]
      %v666 = vld [vmem:[%s643 + $0xb0] sm:$0xff]
      %v667 = vld [vmem:[%s643 + $0xb8] sm:$0xff]
      %v668 = vld [vmem:[%s643 + $0xc0] sm:$0xff]
      %v669 = vld [vmem:[%s643 + $0xc8] sm:$0xff]
      %v670 = vld [vmem:[%s643 + $0xd0] sm:$0xff]
      %v671 = vld [vmem:[%s643 + $0xd8] sm:$0xff]
      %v672 = vld [vmem:[%s643 + $0xe0] sm:$0xff]
      %v673 = vld [vmem:[%s643 + $0xe8] sm:$0xff]
      %v674 = vld [vmem:[%s643 + $0xf0] sm:$0xff]
      %v675 = vld [vmem:[%s643 + $0xf8] sm:$0xff]
      %vm680 = vcmask 1040384
      %v681 = vrot.slane %v639, 7
      %v682 = vrot.slane %v217, 7
      %v683 = vsel %vm680, %v681, %v682
      %v684 = vrot.slane %v640, 7
      %v685 = vrot.slane %v218, 7
      %v686 = vsel %vm680, %v684, %v685
      %v687 = vrot.slane %v641, 7
      %v688 = vsel %vm680, %v682, %v687
      %v689 = vrot.slane %v642, 7
      %v690 = vsel %vm680, %v685, %v689
      %695 = vmatprep.subr.mxu0 0.0
      %696 = vmatpush1.msra.mxu0 %v644
      %697 = vmatprep.subr.mxu0 0.0
      %698 = vmatpush1.msra.mxu0 %v645
      %699 = vmatprep.subr.mxu0 0.0
      %700 = vmatpush1.msra.mxu0 %v646
      %701 = vmatprep.subr.mxu0 0.0
      %702 = vmatpush1.msra.mxu0 %v647
      %703 = vmatprep.subr.mxu0 0.0
      %704 = vmatpush1.msra.mxu0 %v648
      %705 = vmatprep.subr.mxu0 0.0
      %706 = vmatpush1.msra.mxu0 %v649
      %707 = vmatprep.subr.mxu0 0.0
      %708 = vmatpush1.msra.mxu0 %v650
      %709 = vmatprep.subr.mxu0 0.0
      %710 = vmatpush1.msra.mxu0 %v651
      %711 = vmatprep.subr.mxu0 0.0
      %712 = vmatpush1.msra.mxu0 %v652
      %713 = vmatprep.subr.mxu0 0.0
      %714 = vmatpush1.msra.mxu0 %v653
      %715 = vmatprep.subr.mxu0 0.0
      %716 = vmatpush1.msra.mxu0 %v654
      %717 = vmatprep.subr.mxu0 0.0
      %718 = vmatpush1.msra.mxu0 %v655
      %719 = vmatprep.subr.mxu0 0.0
      %720 = vmatpush1.msra.mxu0 %v656
      %721 = vmatprep.subr.mxu0 0.0
      %722 = vmatpush1.msra.mxu0 %v657
      %723 = vmatprep.subr.mxu0 0.0
      %724 = vmatpush1.msra.mxu0 %v658
      %725 = vmatprep.subr.mxu0 0.0
      %726 = vmatpush1.msra.mxu0 %v659
      %727 = vmatprep.subr.mxu0 0.0
      %728 = vmatpush1.msra.mxu0 %v660
      %729 = vmatprep.subr.mxu0 0.0
      %730 = vmatpush1.msra.mxu0 %v661
      %731 = vmatprep.subr.mxu0 0.0
      %732 = vmatpush1.msra.mxu0 %v662
      %733 = vmatprep.subr.mxu0 0.0
      %734 = vmatpush1.msra.mxu0 %v663
      %735 = vmatprep.subr.mxu0 0.0
      %736 = vmatpush1.msra.mxu0 %v664
      %737 = vmatprep.subr.mxu0 0.0
      %738 = vmatpush1.msra.mxu0 %v665
      %739 = vmatprep.subr.mxu0 0.0
      %740 = vmatpush1.msra.mxu0 %v666
      %741 = vmatprep.subr.mxu0 0.0
      %742 = vmatpush1.msra.mxu0 %v667
      %743 = vmatprep.subr.mxu0 0.0
      %744 = vmatpush1.msra.mxu0 %v668
      %745 = vmatprep.subr.mxu0 0.0
      %746 = vmatpush1.msra.mxu0 %v669
      %747 = vmatprep.subr.mxu0 0.0
      %748 = vmatpush1.msra.mxu0 %v670
      %749 = vmatprep.subr.mxu0 0.0
      %750 = vmatpush1.msra.mxu0 %v671
      %751 = vmatprep.subr.mxu0 0.0
      %752 = vmatpush1.msra.mxu0 %v672
      %753 = vmatprep.subr.mxu0 0.0
      %754 = vmatpush1.msra.mxu0 %v673
      %755 = vmatprep.subr.mxu0 0.0
      %756 = vmatpush1.msra.mxu0 %v674
      %757 = vmatprep.subr.mxu0 0.0
      %758 = vmatpush1.msra.mxu0 %v675
      %759 = vmatprep.mubr.f32.mxu0 %v686
      %760 = vmatmul.mubr.f32.gmra.mrb[0].mxu0 %v683
      %v761 = vpop.f32.mrb[0].mxu0
      %v762 = vadd.f32 0.0, %v761
      %v763 = vpop.f32.mrb[0].mxu0
      %764 = vmatprep.mubr.f32.mxu0 %v690
      %765 = vmatmul.mubr.f32.gmra.mrb[0].mxu0 %v688
      %v766 = vpop.f32.mrb[0].mxu0
      %v767 = vadd.f32 0.0, %v766
      %v768 = vpop.f32.mrb[0].mxu0
      %769 = vdwg.mxu0
      %v770 = vmul.f32 %v762, %v352
      %v771 = vmul.f32 %v767, %v357
      %v772 = vadd.f32 %v637, %v770
      %v773 = vadd.f32 %v638, %v771
      %v774 = vld [vmem:[#allocation2 + $0x20] sm:$0xff]
      %v775 = vld [vmem:[#allocation2 + $0x28] sm:$0xff]
      %s776 = scalar_lea.vmem %s1, 1024
      %v777 = vld [vmem:[%s776] sm:$0xff]
      %v778 = vld [vmem:[%s776 + $0x8] sm:$0xff]
      %v779 = vld [vmem:[%s776 + $0x10] sm:$0xff]
      %v780 = vld [vmem:[%s776 + $0x18] sm:$0xff]
      %v781 = vld [vmem:[%s776 + $0x20] sm:$0xff]
      %v782 = vld [vmem:[%s776 + $0x28] sm:$0xff]
      %v783 = vld [vmem:[%s776 + $0x30] sm:$0xff]
      %v784 = vld [vmem:[%s776 + $0x38] sm:$0xff]
      %v785 = vld [vmem:[%s776 + $0x40] sm:$0xff]
      %v786 = vld [vmem:[%s776 + $0x48] sm:$0xff]
      %v787 = vld [vmem:[%s776 + $0x50] sm:$0xff]
      %v788 = vld [vmem:[%s776 + $0x58] sm:$0xff]
      %v789 = vld [vmem:[%s776 + $0x60] sm:$0xff]
      %v790 = vld [vmem:[%s776 + $0x68] sm:$0xff]
      %v791 = vld [vmem:[%s776 + $0x70] sm:$0xff]
      %v792 = vld [vmem:[%s776 + $0x78] sm:$0xff]
      %v793 = vld [vmem:[%s776 + $0x80] sm:$0xff]
      %v794 = vld [vmem:[%s776 + $0x88] sm:$0xff]
      %v795 = vld [vmem:[%s776 + $0x90] sm:$0xff]
      %v796 = vld [vmem:[%s776 + $0x98] sm:$0xff]
      %v797 = vld [vmem:[%s776 + $0xa0] sm:$0xff]
      %v798 = vld [vmem:[%s776 + $0xa8] sm:$0xff]
      %v799 = vld [vmem:[%s776 + $0xb0] sm:$0xff]
      %v800 = vld [vmem:[%s776 + $0xb8] sm:$0xff]
      %v801 = vld [vmem:[%s776 + $0xc0] sm:$0xff]
      %v802 = vld [vmem:[%s776 + $0xc8] sm:$0xff]
      %v803 = vld [vmem:[%s776 + $0xd0] sm:$0xff]
      %v804 = vld [vmem:[%s776 + $0xd8] sm:$0xff]
      %v805 = vld [vmem:[%s776 + $0xe0] sm:$0xff]
      %v806 = vld [vmem:[%s776 + $0xe8] sm:$0xff]
      %v807 = vld [vmem:[%s776 + $0xf0] sm:$0xff]
      %v808 = vld [vmem:[%s776 + $0xf8] sm:$0xff]
      %809 = vmatprep.subr.mxu0 0.0
      %810 = vmatpush1.msra.mxu0 %v777
      %811 = vmatprep.subr.mxu0 0.0
      %812 = vmatpush1.msra.mxu0 %v778
      %813 = vmatprep.subr.mxu0 0.0
      %814 = vmatpush1.msra.mxu0 %v779
      %815 = vmatprep.subr.mxu0 0.0
      %816 = vmatpush1.msra.mxu0 %v780
      %817 = vmatprep.subr.mxu0 0.0
      %818 = vmatpush1.msra.mxu0 %v781
      %819 = vmatprep.subr.mxu0 0.0
      %820 = vmatpush1.msra.mxu0 %v782
      %821 = vmatprep.subr.mxu0 0.0
      %822 = vmatpush1.msra.mxu0 %v783
      %823 = vmatprep.subr.mxu0 0.0
      %824 = vmatpush1.msra.mxu0 %v784
      %825 = vmatprep.subr.mxu0 0.0
      %826 = vmatpush1.msra.mxu0 %v785
      %827 = vmatprep.subr.mxu0 0.0
      %828 = vmatpush1.msra.mxu0 %v786
      %829 = vmatprep.subr.mxu0 0.0
      %830 = vmatpush1.msra.mxu0 %v787
      %831 = vmatprep.subr.mxu0 0.0
      %832 = vmatpush1.msra.mxu0 %v788
      %833 = vmatprep.subr.mxu0 0.0
      %834 = vmatpush1.msra.mxu0 %v789
      %835 = vmatprep.subr.mxu0 0.0
      %836 = vmatpush1.msra.mxu0 %v790
      %837 = vmatprep.subr.mxu0 0.0
      %838 = vmatpush1.msra.mxu0 %v791
      %839 = vmatprep.subr.mxu0 0.0
      %840 = vmatpush1.msra.mxu0 %v792
      %841 = vmatprep.subr.mxu0 0.0
      %842 = vmatpush1.msra.mxu0 %v793
      %843 = vmatprep.subr.mxu0 0.0
      %844 = vmatpush1.msra.mxu0 %v794
      %845 = vmatprep.subr.mxu0 0.0
      %846 = vmatpush1.msra.mxu0 %v795
      %847 = vmatprep.subr.mxu0 0.0
      %848 = vmatpush1.msra.mxu0 %v796
      %849 = vmatprep.subr.mxu0 0.0
      %850 = vmatpush1.msra.mxu0 %v797
      %851 = vmatprep.subr.mxu0 0.0
      %852 = vmatpush1.msra.mxu0 %v798
      %853 = vmatprep.subr.mxu0 0.0
      %854 = vmatpush1.msra.mxu0 %v799
      %855 = vmatprep.subr.mxu0 0.0
      %856 = vmatpush1.msra.mxu0 %v800
      %857 = vmatprep.subr.mxu0 0.0
      %858 = vmatpush1.msra.mxu0 %v801
      %859 = vmatprep.subr.mxu0 0.0
      %860 = vmatpush1.msra.mxu0 %v802
      %861 = vmatprep.subr.mxu0 0.0
      %862 = vmatpush1.msra.mxu0 %v803
      %863 = vmatprep.subr.mxu0 0.0
      %864 = vmatpush1.msra.mxu0 %v804
      %865 = vmatprep.subr.mxu0 0.0
      %866 = vmatpush1.msra.mxu0 %v805
      %867 = vmatprep.subr.mxu0 0.0
      %868 = vmatpush1.msra.mxu0 %v806
      %869 = vmatprep.subr.mxu0 0.0
      %870 = vmatpush1.msra.mxu0 %v807
      %871 = vmatprep.subr.mxu0 0.0
      %872 = vmatpush1.msra.mxu0 %v808
      %873 = vmatprep.mubr.f32.mxu0 %v218
      %874 = vmatmul.mubr.f32.gmra.mrb[0].mxu0 %v217
      %v875 = vpop.f32.mrb[0].mxu0
      %v876 = vadd.f32 0.0, %v875
      %v877 = vpop.f32.mrb[0].mxu0
      %878 = vmatprep.mubr.f32.mxu0 %v775
      %879 = vmatmul.mubr.f32.gmra.mrb[0].mxu0 %v774
      %v880 = vpop.f32.mrb[0].mxu0
      %v881 = vadd.f32 0.0, %v880
      %v882 = vpop.f32.mrb[0].mxu0
      %883 = vdwg.mxu0
      %v884 = vadd.f32 %v772, %v876
      %v885 = vadd.f32 %v773, %v881
      %v886 = vld [vmem:[#allocation2 + $0x10] sm:$0xfe]
      %v887 = vld [vmem:[#allocation2 + $0x18] sm:$0xfe]
      %v888 = vld [vmem:[#allocation2 + $0x20] sm:$0xff]
      %v889 = vld [vmem:[#allocation2 + $0x28] sm:$0xff]
      %v890 = vld [vmem:[#allocation2 + $0x30] sm:$0x1]
      %v891 = vld [vmem:[#allocation2 + $0x38] sm:$0x1]
      %s892 = scalar_lea.vmem %s1, 1280
      %v893 = vld [vmem:[%s892] sm:$0xff]
      %v894 = vld [vmem:[%s892 + $0x8] sm:$0xff]
      %v895 = vld [vmem:[%s892 + $0x10] sm:$0xff]
      %v896 = vld [vmem:[%s892 + $0x18] sm:$0xff]
      %v897 = vld [vmem:[%s892 + $0x20] sm:$0xff]
      %v898 = vld [vmem:[%s892 + $0x28] sm:$0xff]
      %v899 = vld [vmem:[%s892 + $0x30] sm:$0xff]
      %v900 = vld [vmem:[%s892 + $0x38] sm:$0xff]
      %v901 = vld [vmem:[%s892 + $0x40] sm:$0xff]
      %v902 = vld [vmem:[%s892 + $0x48] sm:$0xff]
      %v903 = vld [vmem:[%s892 + $0x50] sm:$0xff]
      %v904 = vld [vmem:[%s892 + $0x58] sm:$0xff]
      %v905 = vld [vmem:[%s892 + $0x60] sm:$0xff]
      %v906 = vld [vmem:[%s892 + $0x68] sm:$0xff]
      %v907 = vld [vmem:[%s892 + $0x70] sm:$0xff]
      %v908 = vld [vmem:[%s892 + $0x78] sm:$0xff]
      %v909 = vld [vmem:[%s892 + $0x80] sm:$0xff]
      %v910 = vld [vmem:[%s892 + $0x88] sm:$0xff]
      %v911 = vld [vmem:[%s892 + $0x90] sm:$0xff]
      %v912 = vld [vmem:[%s892 + $0x98] sm:$0xff]
      %v913 = vld [vmem:[%s892 + $0xa0] sm:$0xff]
      %v914 = vld [vmem:[%s892 + $0xa8] sm:$0xff]
      %v915 = vld [vmem:[%s892 + $0xb0] sm:$0xff]
      %v916 = vld [vmem:[%s892 + $0xb8] sm:$0xff]
      %v917 = vld [vmem:[%s892 + $0xc0] sm:$0xff]
      %v918 = vld [vmem:[%s892 + $0xc8] sm:$0xff]
      %v919 = vld [vmem:[%s892 + $0xd0] sm:$0xff]
      %v920 = vld [vmem:[%s892 + $0xd8] sm:$0xff]
      %v921 = vld [vmem:[%s892 + $0xe0] sm:$0xff]
      %v922 = vld [vmem:[%s892 + $0xe8] sm:$0xff]
      %v923 = vld [vmem:[%s892 + $0xf0] sm:$0xff]
      %v924 = vld [vmem:[%s892 + $0xf8] sm:$0xff]
      %vm931 = vcmask 1046528
      %v932 = vrot.slane %v886, 1
      %v933 = vrot.slane %v888, 1
      %v934 = vsel %vm931, %v932, %v933
      %v935 = vrot.slane %v887, 1
      %v936 = vrot.slane %v889, 1
      %v937 = vsel %vm931, %v935, %v936
      %v938 = vrot.slane %v890, 1
      %v939 = vsel %vm931, %v933, %v938
      %v940 = vrot.slane %v891, 1
      %v941 = vsel %vm931, %v936, %v940
      %946 = vmatprep.subr.mxu0 0.0
      %947 = vmatpush1.msra.mxu0 %v893
      %948 = vmatprep.subr.mxu0 0.0
      %949 = vmatpush1.msra.mxu0 %v894
      %950 = vmatprep.subr.mxu0 0.0
      %951 = vmatpush1.msra.mxu0 %v895
      %952 = vmatprep.subr.mxu0 0.0
      %953 = vmatpush1.msra.mxu0 %v896
      %954 = vmatprep.subr.mxu0 0.0
      %955 = vmatpush1.msra.mxu0 %v897
      %956 = vmatprep.subr.mxu0 0.0
      %957 = vmatpush1.msra.mxu0 %v898
      %958 = vmatprep.subr.mxu0 0.0
      %959 = vmatpush1.msra.mxu0 %v899
      %960 = vmatprep.subr.mxu0 0.0
      %961 = vmatpush1.msra.mxu0 %v900
      %962 = vmatprep.subr.mxu0 0.0
      %963 = vmatpush1.msra.mxu0 %v901
      %964 = vmatprep.subr.mxu0 0.0
      %965 = vmatpush1.msra.mxu0 %v902
      %966 = vmatprep.subr.mxu0 0.0
      %967 = vmatpush1.msra.mxu0 %v903
      %968 = vmatprep.subr.mxu0 0.0
      %969 = vmatpush1.msra.mxu0 %v904
      %970 = vmatprep.subr.mxu0 0.0
      %971 = vmatpush1.msra.mxu0 %v905
      %972 = vmatprep.subr.mxu0 0.0
      %973 = vmatpush1.msra.mxu0 %v906
      %974 = vmatprep.subr.mxu0 0.0
      %975 = vmatpush1.msra.mxu0 %v907
      %976 = vmatprep.subr.mxu0 0.0
      %977 = vmatpush1.msra.mxu0 %v908
      %978 = vmatprep.subr.mxu0 0.0
      %979 = vmatpush1.msra.mxu0 %v909
      %980 = vmatprep.subr.mxu0 0.0
      %981 = vmatpush1.msra.mxu0 %v910
      %982 = vmatprep.subr.mxu0 0.0
      %983 = vmatpush1.msra.mxu0 %v911
      %984 = vmatprep.subr.mxu0 0.0
      %985 = vmatpush1.msra.mxu0 %v912
      %986 = vmatprep.subr.mxu0 0.0
      %987 = vmatpush1.msra.mxu0 %v913
      %988 = vmatprep.subr.mxu0 0.0
      %989 = vmatpush1.msra.mxu0 %v914
      %990 = vmatprep.subr.mxu0 0.0
      %991 = vmatpush1.msra.mxu0 %v915
      %992 = vmatprep.subr.mxu0 0.0
      %993 = vmatpush1.msra.mxu0 %v916
      %994 = vmatprep.subr.mxu0 0.0
      %995 = vmatpush1.msra.mxu0 %v917
      %996 = vmatprep.subr.mxu0 0.0
      %997 = vmatpush1.msra.mxu0 %v918
      %998 = vmatprep.subr.mxu0 0.0
      %999 = vmatpush1.msra.mxu0 %v919
      %1000 = vmatprep.subr.mxu0 0.0
      %1001 = vmatpush1.msra.mxu0 %v920
      %1002 = vmatprep.subr.mxu0 0.0
      %1003 = vmatpush1.msra.mxu0 %v921
      %1004 = vmatprep.subr.mxu0 0.0
      %1005 = vmatpush1.msra.mxu0 %v922
      %1006 = vmatprep.subr.mxu0 0.0
      %1007 = vmatpush1.msra.mxu0 %v923
      %1008 = vmatprep.subr.mxu0 0.0
      %1009 = vmatpush1.msra.mxu0 %v924
      %1010 = vmatprep.mubr.f32.mxu0 %v937
      %1011 = vmatmul.mubr.f32.gmra.mrb[0].mxu0 %v934
      %v1012 = vpop.f32.mrb[0].mxu0
      %v1013 = vadd.f32 0.0, %v1012
      %v1014 = vpop.f32.mrb[0].mxu0
      %1015 = vmatprep.mubr.f32.mxu0 %v941
      %1016 = vmatmul.mubr.f32.gmra.mrb[0].mxu0 %v939
      %v1017 = vpop.f32.mrb[0].mxu0
      %v1018 = vadd.f32 0.0, %v1017
      %v1019 = vpop.f32.mrb[0].mxu0
      %1020 = vdwg.mxu0
      %v1021 = vmul.f32 %v1013, %v629
      %v1022 = vmul.f32 %v1018, %v633
      %v1023 = vadd.f32 %v884, %v1021
      %v1024 = vadd.f32 %v885, %v1022
      %v1025 = vld [vmem:[#allocation2 + $0x10] sm:$0xf8]
      %v1026 = vld [vmem:[#allocation2 + $0x18] sm:$0xf8]
      %v1027 = vld [vmem:[#allocation2 + $0x30] sm:$0x7]
      %v1028 = vld [vmem:[#allocation2 + $0x38] sm:$0x7]
      %s1029 = scalar_lea.vmem %s1, 1536
      %v1030 = vld [vmem:[%s1029] sm:$0xff]
      %v1031 = vld [vmem:[%s1029 + $0x8] sm:$0xff]
      %v1032 = vld [vmem:[%s1029 + $0x10] sm:$0xff]
      %v1033 = vld [vmem:[%s1029 + $0x18] sm:$0xff]
      %v1034 = vld [vmem:[%s1029 + $0x20] sm:$0xff]
      %v1035 = vld [vmem:[%s1029 + $0x28] sm:$0xff]
      %v1036 = vld [vmem:[%s1029 + $0x30] sm:$0xff]
      %v1037 = vld [vmem:[%s1029 + $0x38] sm:$0xff]
      %v1038 = vld [vmem:[%s1029 + $0x40] sm:$0xff]
      %v1039 = vld [vmem:[%s1029 + $0x48] sm:$0xff]
      %v1040 = vld [vmem:[%s1029 + $0x50] sm:$0xff]
      %v1041 = vld [vmem:[%s1029 + $0x58] sm:$0xff]
      %v1042 = vld [vmem:[%s1029 + $0x60] sm:$0xff]
      %v1043 = vld [vmem:[%s1029 + $0x68] sm:$0xff]
      %v1044 = vld [vmem:[%s1029 + $0x70] sm:$0xff]
      %v1045 = vld [vmem:[%s1029 + $0x78] sm:$0xff]
      %v1046 = vld [vmem:[%s1029 + $0x80] sm:$0xff]
      %v1047 = vld [vmem:[%s1029 + $0x88] sm:$0xff]
      %v1048 = vld [vmem:[%s1029 + $0x90] sm:$0xff]
      %v1049 = vld [vmem:[%s1029 + $0x98] sm:$0xff]
      %v1050 = vld [vmem:[%s1029 + $0xa0] sm:$0xff]
      %v1051 = vld [vmem:[%s1029 + $0xa8] sm:$0xff]
      %v1052 = vld [vmem:[%s1029 + $0xb0] sm:$0xff]
      %v1053 = vld [vmem:[%s1029 + $0xb8] sm:$0xff]
      %v1054 = vld [vmem:[%s1029 + $0xc0] sm:$0xff]
      %v1055 = vld [vmem:[%s1029 + $0xc8] sm:$0xff]
      %v1056 = vld [vmem:[%s1029 + $0xd0] sm:$0xff]
      %v1057 = vld [vmem:[%s1029 + $0xd8] sm:$0xff]
      %v1058 = vld [vmem:[%s1029 + $0xe0] sm:$0xff]
      %v1059 = vld [vmem:[%s1029 + $0xe8] sm:$0xff]
      %v1060 = vld [vmem:[%s1029 + $0xf0] sm:$0xff]
      %v1061 = vld [vmem:[%s1029 + $0xf8] sm:$0xff]
      %v1066 = vrot.slane %v1025, 3
      %v1067 = vrot.slane %v888, 3
      %v1068 = vsel %vm259, %v1066, %v1067
      %v1069 = vrot.slane %v1026, 3
      %v1070 = vrot.slane %v889, 3
      %v1071 = vsel %vm259, %v1069, %v1070
      %v1072 = vrot.slane %v1027, 3
      %v1073 = vsel %vm259, %v1067, %v1072
      %v1074 = vrot.slane %v1028, 3
      %v1075 = vsel %vm259, %v1070, %v1074
      %1080 = vmatprep.subr.mxu0 0.0
      %1081 = vmatpush1.msra.mxu0 %v1030
      %1082 = vmatprep.subr.mxu0 0.0
      %1083 = vmatpush1.msra.mxu0 %v1031
      %1084 = vmatprep.subr.mxu0 0.0
      %1085 = vmatpush1.msra.mxu0 %v1032
      %1086 = vmatprep.subr.mxu0 0.0
      %1087 = vmatpush1.msra.mxu0 %v1033
      %1088 = vmatprep.subr.mxu0 0.0
      %1089 = vmatpush1.msra.mxu0 %v1034
      %1090 = vmatprep.subr.mxu0 0.0
      %1091 = vmatpush1.msra.mxu0 %v1035
      %1092 = vmatprep.subr.mxu0 0.0
      %1093 = vmatpush1.msra.mxu0 %v1036
      %1094 = vmatprep.subr.mxu0 0.0
      %1095 = vmatpush1.msra.mxu0 %v1037
      %1096 = vmatprep.subr.mxu0 0.0
      %1097 = vmatpush1.msra.mxu0 %v1038
      %1098 = vmatprep.subr.mxu0 0.0
      %1099 = vmatpush1.msra.mxu0 %v1039
      %1100 = vmatprep.subr.mxu0 0.0
      %1101 = vmatpush1.msra.mxu0 %v1040
      %1102 = vmatprep.subr.mxu0 0.0
      %1103 = vmatpush1.msra.mxu0 %v1041
      %1104 = vmatprep.subr.mxu0 0.0
      %1105 = vmatpush1.msra.mxu0 %v1042
      %1106 = vmatprep.subr.mxu0 0.0
      %1107 = vmatpush1.msra.mxu0 %v1043
      %1108 = vmatprep.subr.mxu0 0.0
      %1109 = vmatpush1.msra.mxu0 %v1044
      %1110 = vmatprep.subr.mxu0 0.0
      %1111 = vmatpush1.msra.mxu0 %v1045
      %1112 = vmatprep.subr.mxu0 0.0
      %1113 = vmatpush1.msra.mxu0 %v1046
      %1114 = vmatprep.subr.mxu0 0.0
      %1115 = vmatpush1.msra.mxu0 %v1047
      %1116 = vmatprep.subr.mxu0 0.0
      %1117 = vmatpush1.msra.mxu0 %v1048
      %1118 = vmatprep.subr.mxu0 0.0
      %1119 = vmatpush1.msra.mxu0 %v1049
      %1120 = vmatprep.subr.mxu0 0.0
      %1121 = vmatpush1.msra.mxu0 %v1050
      %1122 = vmatprep.subr.mxu0 0.0
      %1123 = vmatpush1.msra.mxu0 %v1051
      %1124 = vmatprep.subr.mxu0 0.0
      %1125 = vmatpush1.msra.mxu0 %v1052
      %1126 = vmatprep.subr.mxu0 0.0
      %1127 = vmatpush1.msra.mxu0 %v1053
      %1128 = vmatprep.subr.mxu0 0.0
      %1129 = vmatpush1.msra.mxu0 %v1054
      %1130 = vmatprep.subr.mxu0 0.0
      %1131 = vmatpush1.msra.mxu0 %v1055
      %1132 = vmatprep.subr.mxu0 0.0
      %1133 = vmatpush1.msra.mxu0 %v1056
      %1134 = vmatprep.subr.mxu0 0.0
      %1135 = vmatpush1.msra.mxu0 %v1057
      %1136 = vmatprep.subr.mxu0 0.0
      %1137 = vmatpush1.msra.mxu0 %v1058
      %1138 = vmatprep.subr.mxu0 0.0
      %1139 = vmatpush1.msra.mxu0 %v1059
      %1140 = vmatprep.subr.mxu0 0.0
      %1141 = vmatpush1.msra.mxu0 %v1060
      %1142 = vmatprep.subr.mxu0 0.0
      %1143 = vmatpush1.msra.mxu0 %v1061
      %1144 = vmatprep.mubr.f32.mxu0 %v1071
      %1145 = vmatmul.mubr.f32.gmra.mrb[0].mxu0 %v1068
      %v1146 = vpop.f32.mrb[0].mxu0
      %v1147 = vadd.f32 0.0, %v1146
      %v1148 = vpop.f32.mrb[0].mxu0
      %1149 = vmatprep.mubr.f32.mxu0 %v1075
      %1150 = vmatmul.mubr.f32.gmra.mrb[0].mxu0 %v1073
      %v1151 = vpop.f32.mrb[0].mxu0
      %v1152 = vadd.f32 0.0, %v1151
      %v1153 = vpop.f32.mrb[0].mxu0
      %1154 = vdwg.mxu0
      %v1155 = vmul.f32 %v1147, %v352
      %v1156 = vmul.f32 %v1152, %v357
      %v1157 = vadd.f32 %v1023, %v1155
      %v1158 = vadd.f32 %v1024, %v1156
      %v1159 = vld [vmem:[#allocation2 + $0x10] sm:$0xf0]
      %v1160 = vld [vmem:[#allocation2 + $0x18] sm:$0xf0]
      %v1161 = vld [vmem:[#allocation2 + $0x30] sm:$0xf]
      %v1162 = vld [vmem:[#allocation2 + $0x38] sm:$0xf]
      %s1163 = scalar_lea.vmem %s1, 1792
      %v1164 = vld [vmem:[%s1163] sm:$0xff]
      %v1165 = vld [vmem:[%s1163 + $0x8] sm:$0xff]
      %v1166 = vld [vmem:[%s1163 + $0x10] sm:$0xff]
      %v1167 = vld [vmem:[%s1163 + $0x18] sm:$0xff]
      %v1168 = vld [vmem:[%s1163 + $0x20] sm:$0xff]
      %v1169 = vld [vmem:[%s1163 + $0x28] sm:$0xff]
      %v1170 = vld [vmem:[%s1163 + $0x30] sm:$0xff]
      %v1171 = vld [vmem:[%s1163 + $0x38] sm:$0xff]
      %v1172 = vld [vmem:[%s1163 + $0x40] sm:$0xff]
      %v1173 = vld [vmem:[%s1163 + $0x48] sm:$0xff]
      %v1174 = vld [vmem:[%s1163 + $0x50] sm:$0xff]
      %v1175 = vld [vmem:[%s1163 + $0x58] sm:$0xff]
      %v1176 = vld [vmem:[%s1163 + $0x60] sm:$0xff]
      %v1177 = vld [vmem:[%s1163 + $0x68] sm:$0xff]
      %v1178 = vld [vmem:[%s1163 + $0x70] sm:$0xff]
      %v1179 = vld [vmem:[%s1163 + $0x78] sm:$0xff]
      %v1180 = vld [vmem:[%s1163 + $0x80] sm:$0xff]
      %v1181 = vld [vmem:[%s1163 + $0x88] sm:$0xff]
      %v1182 = vld [vmem:[%s1163 + $0x90] sm:$0xff]
      %v1183 = vld [vmem:[%s1163 + $0x98] sm:$0xff]
      %v1184 = vld [vmem:[%s1163 + $0xa0] sm:$0xff]
      %v1185 = vld [vmem:[%s1163 + $0xa8] sm:$0xff]
      %v1186 = vld [vmem:[%s1163 + $0xb0] sm:$0xff]
      %v1187 = vld [vmem:[%s1163 + $0xb8] sm:$0xff]
      %v1188 = vld [vmem:[%s1163 + $0xc0] sm:$0xff]
      %v1189 = vld [vmem:[%s1163 + $0xc8] sm:$0xff]
      %v1190 = vld [vmem:[%s1163 + $0xd0] sm:$0xff]
      %v1191 = vld [vmem:[%s1163 + $0xd8] sm:$0xff]
      %v1192 = vld [vmem:[%s1163 + $0xe0] sm:$0xff]
      %v1193 = vld [vmem:[%s1163 + $0xe8] sm:$0xff]
      %v1194 = vld [vmem:[%s1163 + $0xf0] sm:$0xff]
      %v1195 = vld [vmem:[%s1163 + $0xf8] sm:$0xff]
      %v1200 = vrot.slane %v1159, 4
      %v1201 = vrot.slane %v888, 4
      %v1202 = vsel %vm404, %v1200, %v1201
      %v1203 = vrot.slane %v1160, 4
      %v1204 = vrot.slane %v889, 4
      %v1205 = vsel %vm404, %v1203, %v1204
      %v1206 = vrot.slane %v1161, 4
      %v1207 = vsel %vm404, %v1201, %v1206
      %v1208 = vrot.slane %v1162, 4
      %v1209 = vsel %vm404, %v1204, %v1208
      %1214 = vmatprep.subr.mxu0 0.0
      %1215 = vmatpush1.msra.mxu0 %v1164
      %1216 = vmatprep.subr.mxu0 0.0
      %1217 = vmatpush1.msra.mxu0 %v1165
      %1218 = vmatprep.subr.mxu0 0.0
      %1219 = vmatpush1.msra.mxu0 %v1166
      %1220 = vmatprep.subr.mxu0 0.0
      %1221 = vmatpush1.msra.mxu0 %v1167
      %1222 = vmatprep.subr.mxu0 0.0
      %1223 = vmatpush1.msra.mxu0 %v1168
      %1224 = vmatprep.subr.mxu0 0.0
      %1225 = vmatpush1.msra.mxu0 %v1169
      %1226 = vmatprep.subr.mxu0 0.0
      %1227 = vmatpush1.msra.mxu0 %v1170
      %1228 = vmatprep.subr.mxu0 0.0
      %1229 = vmatpush1.msra.mxu0 %v1171
      %1230 = vmatprep.subr.mxu0 0.0
      %1231 = vmatpush1.msra.mxu0 %v1172
      %1232 = vmatprep.subr.mxu0 0.0
      %1233 = vmatpush1.msra.mxu0 %v1173
      %1234 = vmatprep.subr.mxu0 0.0
      %1235 = vmatpush1.msra.mxu0 %v1174
      %1236 = vmatprep.subr.mxu0 0.0
      %1237 = vmatpush1.msra.mxu0 %v1175
      %1238 = vmatprep.subr.mxu0 0.0
      %1239 = vmatpush1.msra.mxu0 %v1176
      %1240 = vmatprep.subr.mxu0 0.0
      %1241 = vmatpush1.msra.mxu0 %v1177
      %1242 = vmatprep.subr.mxu0 0.0
      %1243 = vmatpush1.msra.mxu0 %v1178
      %1244 = vmatprep.subr.mxu0 0.0
      %1245 = vmatpush1.msra.mxu0 %v1179
      %1246 = vmatprep.subr.mxu0 0.0
      %1247 = vmatpush1.msra.mxu0 %v1180
      %1248 = vmatprep.subr.mxu0 0.0
      %1249 = vmatpush1.msra.mxu0 %v1181
      %1250 = vmatprep.subr.mxu0 0.0
      %1251 = vmatpush1.msra.mxu0 %v1182
      %1252 = vmatprep.subr.mxu0 0.0
      %1253 = vmatpush1.msra.mxu0 %v1183
      %1254 = vmatprep.subr.mxu0 0.0
      %1255 = vmatpush1.msra.mxu0 %v1184
      %1256 = vmatprep.subr.mxu0 0.0
      %1257 = vmatpush1.msra.mxu0 %v1185
      %1258 = vmatprep.subr.mxu0 0.0
      %1259 = vmatpush1.msra.mxu0 %v1186
      %1260 = vmatprep.subr.mxu0 0.0
      %1261 = vmatpush1.msra.mxu0 %v1187
      %1262 = vmatprep.subr.mxu0 0.0
      %1263 = vmatpush1.msra.mxu0 %v1188
      %1264 = vmatprep.subr.mxu0 0.0
      %1265 = vmatpush1.msra.mxu0 %v1189
      %1266 = vmatprep.subr.mxu0 0.0
      %1267 = vmatpush1.msra.mxu0 %v1190
      %1268 = vmatprep.subr.mxu0 0.0
      %1269 = vmatpush1.msra.mxu0 %v1191
      %1270 = vmatprep.subr.mxu0 0.0
      %1271 = vmatpush1.msra.mxu0 %v1192
      %1272 = vmatprep.subr.mxu0 0.0
      %1273 = vmatpush1.msra.mxu0 %v1193
      %1274 = vmatprep.subr.mxu0 0.0
      %1275 = vmatpush1.msra.mxu0 %v1194
      %1276 = vmatprep.subr.mxu0 0.0
      %1277 = vmatpush1.msra.mxu0 %v1195
      %1278 = vmatprep.mubr.f32.mxu0 %v1205
      %1279 = vmatmul.mubr.f32.gmra.mrb[0].mxu0 %v1202
      %v1280 = vpop.f32.mrb[0].mxu0
      %v1281 = vadd.f32 0.0, %v1280
      %v1282 = vpop.f32.mrb[0].mxu0
      %1283 = vmatprep.mubr.f32.mxu0 %v1209
      %1284 = vmatmul.mubr.f32.gmra.mrb[0].mxu0 %v1207
      %v1285 = vpop.f32.mrb[0].mxu0
      %v1286 = vadd.f32 0.0, %v1285
      %v1287 = vpop.f32.mrb[0].mxu0
      %1288 = vdwg.mxu0
      %v1289 = vadd.f32 %v1157, %v1281
      %v1290 = vadd.f32 %v1158, %v1286
      %v1291 = vld [vmem:[#allocation2 + $0x10] sm:$0xe0]
      %v1292 = vld [vmem:[#allocation2 + $0x18] sm:$0xe0]
      %v1293 = vld [vmem:[#allocation2 + $0x30] sm:$0x1f]
      %v1294 = vld [vmem:[#allocation2 + $0x38] sm:$0x1f]
      %s1295 = scalar_lea.vmem %s1, 2048
      %v1296 = vld [vmem:[%s1295] sm:$0xff]
      %v1297 = vld [vmem:[%s1295 + $0x8] sm:$0xff]
      %v1298 = vld [vmem:[%s1295 + $0x10] sm:$0xff]
      %v1299 = vld [vmem:[%s1295 + $0x18] sm:$0xff]
      %v1300 = vld [vmem:[%s1295 + $0x20] sm:$0xff]
      %v1301 = vld [vmem:[%s1295 + $0x28] sm:$0xff]
      %v1302 = vld [vmem:[%s1295 + $0x30] sm:$0xff]
      %v1303 = vld [vmem:[%s1295 + $0x38] sm:$0xff]
      %v1304 = vld [vmem:[%s1295 + $0x40] sm:$0xff]
      %v1305 = vld [vmem:[%s1295 + $0x48] sm:$0xff]
      %v1306 = vld [vmem:[%s1295 + $0x50] sm:$0xff]
      %v1307 = vld [vmem:[%s1295 + $0x58] sm:$0xff]
      %v1308 = vld [vmem:[%s1295 + $0x60] sm:$0xff]
      %v1309 = vld [vmem:[%s1295 + $0x68] sm:$0xff]
      %v1310 = vld [vmem:[%s1295 + $0x70] sm:$0xff]
      %v1311 = vld [vmem:[%s1295 + $0x78] sm:$0xff]
      %v1312 = vld [vmem:[%s1295 + $0x80] sm:$0xff]
      %v1313 = vld [vmem:[%s1295 + $0x88] sm:$0xff]
      %v1314 = vld [vmem:[%s1295 + $0x90] sm:$0xff]
      %v1315 = vld [vmem:[%s1295 + $0x98] sm:$0xff]
      %v1316 = vld [vmem:[%s1295 + $0xa0] sm:$0xff]
      %v1317 = vld [vmem:[%s1295 + $0xa8] sm:$0xff]
      %v1318 = vld [vmem:[%s1295 + $0xb0] sm:$0xff]
      %v1319 = vld [vmem:[%s1295 + $0xb8] sm:$0xff]
      %v1320 = vld [vmem:[%s1295 + $0xc0] sm:$0xff]
      %v1321 = vld [vmem:[%s1295 + $0xc8] sm:$0xff]
      %v1322 = vld [vmem:[%s1295 + $0xd0] sm:$0xff]
      %v1323 = vld [vmem:[%s1295 + $0xd8] sm:$0xff]
      %v1324 = vld [vmem:[%s1295 + $0xe0] sm:$0xff]
      %v1325 = vld [vmem:[%s1295 + $0xe8] sm:$0xff]
      %v1326 = vld [vmem:[%s1295 + $0xf0] sm:$0xff]
      %v1327 = vld [vmem:[%s1295 + $0xf8] sm:$0xff]
      %v1332 = vrot.slane %v1291, 5
      %v1333 = vrot.slane %v888, 5
      %v1334 = vsel %vm537, %v1332, %v1333
      %v1335 = vrot.slane %v1292, 5
      %v1336 = vrot.slane %v889, 5
      %v1337 = vsel %vm537, %v1335, %v1336
      %v1338 = vrot.slane %v1293, 5
      %v1339 = vsel %vm537, %v1333, %v1338
      %v1340 = vrot.slane %v1294, 5
      %v1341 = vsel %vm537, %v1336, %v1340
      %1346 = vmatprep.subr.mxu0 0.0
      %1347 = vmatpush1.msra.mxu0 %v1296
      %1348 = vmatprep.subr.mxu0 0.0
      %1349 = vmatpush1.msra.mxu0 %v1297
      %1350 = vmatprep.subr.mxu0 0.0
      %1351 = vmatpush1.msra.mxu0 %v1298
      %1352 = vmatprep.subr.mxu0 0.0
      %1353 = vmatpush1.msra.mxu0 %v1299
      %1354 = vmatprep.subr.mxu0 0.0
      %1355 = vmatpush1.msra.mxu0 %v1300
      %1356 = vmatprep.subr.mxu0 0.0
      %1357 = vmatpush1.msra.mxu0 %v1301
      %1358 = vmatprep.subr.mxu0 0.0
      %1359 = vmatpush1.msra.mxu0 %v1302
      %1360 = vmatprep.subr.mxu0 0.0
      %1361 = vmatpush1.msra.mxu0 %v1303
      %1362 = vmatprep.subr.mxu0 0.0
      %1363 = vmatpush1.msra.mxu0 %v1304
      %1364 = vmatprep.subr.mxu0 0.0
      %1365 = vmatpush1.msra.mxu0 %v1305
      %1366 = vmatprep.subr.mxu0 0.0
      %1367 = vmatpush1.msra.mxu0 %v1306
      %1368 = vmatprep.subr.mxu0 0.0
      %1369 = vmatpush1.msra.mxu0 %v1307
      %1370 = vmatprep.subr.mxu0 0.0
      %1371 = vmatpush1.msra.mxu0 %v1308
      %1372 = vmatprep.subr.mxu0 0.0
      %1373 = vmatpush1.msra.mxu0 %v1309
      %1374 = vmatprep.subr.mxu0 0.0
      %1375 = vmatpush1.msra.mxu0 %v1310
      %1376 = vmatprep.subr.mxu0 0.0
      %1377 = vmatpush1.msra.mxu0 %v1311
      %1378 = vmatprep.subr.mxu0 0.0
      %1379 = vmatpush1.msra.mxu0 %v1312
      %1380 = vmatprep.subr.mxu0 0.0
      %1381 = vmatpush1.msra.mxu0 %v1313
      %1382 = vmatprep.subr.mxu0 0.0
      %1383 = vmatpush1.msra.mxu0 %v1314
      %1384 = vmatprep.subr.mxu0 0.0
      %1385 = vmatpush1.msra.mxu0 %v1315
      %1386 = vmatprep.subr.mxu0 0.0
      %1387 = vmatpush1.msra.mxu0 %v1316
      %1388 = vmatprep.subr.mxu0 0.0
      %1389 = vmatpush1.msra.mxu0 %v1317
      %1390 = vmatprep.subr.mxu0 0.0
      %1391 = vmatpush1.msra.mxu0 %v1318
      %1392 = vmatprep.subr.mxu0 0.0
      %1393 = vmatpush1.msra.mxu0 %v1319
      %1394 = vmatprep.subr.mxu0 0.0
      %1395 = vmatpush1.msra.mxu0 %v1320
      %1396 = vmatprep.subr.mxu0 0.0
      %1397 = vmatpush1.msra.mxu0 %v1321
      %1398 = vmatprep.subr.mxu0 0.0
      %1399 = vmatpush1.msra.mxu0 %v1322
      %1400 = vmatprep.subr.mxu0 0.0
      %1401 = vmatpush1.msra.mxu0 %v1323
      %1402 = vmatprep.subr.mxu0 0.0
      %1403 = vmatpush1.msra.mxu0 %v1324
      %1404 = vmatprep.subr.mxu0 0.0
      %1405 = vmatpush1.msra.mxu0 %v1325
      %1406 = vmatprep.subr.mxu0 0.0
      %1407 = vmatpush1.msra.mxu0 %v1326
      %1408 = vmatprep.subr.mxu0 0.0
      %1409 = vmatpush1.msra.mxu0 %v1327
      %1410 = vmatprep.mubr.f32.mxu0 %v1337
      %1411 = vmatmul.mubr.f32.gmra.mrb[0].mxu0 %v1334
      %v1412 = vpop.f32.mrb[0].mxu0
      %v1413 = vadd.f32 0.0, %v1412
      %v1414 = vpop.f32.mrb[0].mxu0
      %1415 = vmatprep.mubr.f32.mxu0 %v1341
      %1416 = vmatmul.mubr.f32.gmra.mrb[0].mxu0 %v1339
      %v1417 = vpop.f32.mrb[0].mxu0
      %v1418 = vadd.f32 0.0, %v1417
      %v1419 = vpop.f32.mrb[0].mxu0
      %1420 = vdwg.mxu0
      %v1421 = vmul.f32 %v1413, %v629
      %v1422 = vmul.f32 %v1418, %v633
      %v1423 = vadd.f32 %v1289, %v1421
      %v1424 = vadd.f32 %v1290, %v1422
      %s1425 = sld [smem:[#allocation3]]
      %v1426 = vstv %s1425
      %v1427 = vadd.f32 %v1423, %v1426
      %v1428 = vadd.f32 %v1424, %v1426
      %vm1429 = vcmp.ge.f32.partialorder %v1427, 0.0
      %vm1430 = vcmp.ge.f32.partialorder %v1428, 0.0
      %v1431 = vmul.f32 %v1427, 0.01
      %v1432 = vmul.f32 %v1428, 0.01
      %v1433 = vsel %vm1429, %v1427, %v1431
      %v1434 = vsel %vm1430, %v1428, %v1432
      %vm1435 = vcmask 130048
      %1436 = vst.msk [vmem:[%s198] sm:$0xff] %vm1435, %v1433
      %1437 = vst.msk [vmem:[%s198 + $0x8] sm:$0xff] %vm1435, %v1434
      %p1438 = scmp.lt.s32.totalorder %s16, 1
      %s1439 = scalar_select %p1438, %s16, 1
      %s1440 = smul.addr %s1439, 2
      %s1441 = smul.addr %s1440, 8
      %s1442 = scalar_lea.vmem %s4, %s1441
      // Predicated region
      $region37: #{decoder_cnn_cell.3} parent=35 // pred_check
        %p1443 = pneg %p123
      $region38: #{decoder_cnn_cell.3} parent=35 // pred_check_branch
        %1445 = sbr.rel (%p1443) target = $region40
      $region39: #{decoder_cnn_cell.3} parent=35 // pred_region
        _
      $region40: #{decoder_cnn_cell.3} parent=35 // pred_fallthru
        _
    $region36: #{decoder_cnn_cell.3} parent=5 // pred_fallthru
      _
    %p1446 = scmp.le.s32.totalorder 2, %s11
    // Predicated region
    $region41: #{decoder_cnn_cell.3} parent=5 // pred_check
      %p1447 = pneg %p1446
    $region42: #{decoder_cnn_cell.3} parent=5 // pred_check_branch
      %1449 = sbr.rel (%p1447) target = $region44
    $region43: #{decoder_cnn_cell.3} parent=5 // pred_region
      %s1450 = ssub.s32 %s11, 2
      // Predicated region
      $region45: #{decoder_cnn_cell.3} parent=43 // pred_check
        %p1451 = pneg %p129
      $region46: #{decoder_cnn_cell.3} parent=43 // pred_check_branch
        %1453 = sbr.rel (%p1451) target = $region48
      $region47: #{decoder_cnn_cell.3} parent=43 // pred_region
        %p1454 = scmp.lt.s32.totalorder %s17, 1
        %s1455 = scalar_select %p1454, %s17, 1
        %s1456 = smul.addr %s1455, 2
        %s1457 = smul.addr %s1456, 8
        %s1458 = scalar_lea.vmem %s4, %s1457
      $region48: #{decoder_cnn_cell.3} parent=43 // pred_fallthru
        _
    $region44: #{decoder_cnn_cell.3} parent=5 // pred_fallthru
      _
  $region6: #{decoder_cnn_cell.3} parent=0 // loop_footer
    %s15 = sadd.s32 1, %s11
  $region7: #{decoder_cnn_cell.3} parent=0 // loop_footer_branch
    %10 = sbr.rel target = $region3
  $region8: #{decoder_cnn_cell.3} parent=0 // loop_exit
    _

</llo_original>
